<compile_context>
chip_gen: v7x
topology: tpu7x:2x2x1
jax: 0.10.0
libtpu: 0.0.40
codegen_flags: <defaults>
</compile_context>

<pallas_src>
import functools

import numpy as np
import jax
import jax.numpy as jnp
from jax.experimental import pallas as pl
from jax.experimental.pallas import tpu as pltpu


# ---------------------------------------------------------------------------
# Shared in-kernel helper: LayerNorm + multi-head self-attention on a 2-D slab
# ---------------------------------------------------------------------------
def _ln_mha(x, gamma, beta, wqkv, wproj, bproj, ctx_ref, *, bias, num_heads,
            scale, eps):
    """x: (M, C) f32.  Optional `bias` (M, M) f32 additive mask makes attention
    block-diagonal so several independent sequences can be packed into one slab:
    every matmul stays 2-D with a large M (good MXU fill) at the cost of a few %
    extra score FLOPs.  Per-head context vectors are written into `ctx_ref`
    (VMEM, bf16) at their column offset so the output projection runs as ONE
    K=C matmul instead of num_heads K=head_dim matmuls."""
    M, C = x.shape
    hd = C // num_heads

    # LayerNorm in f32.
    mu = jnp.mean(x, axis=-1, keepdims=True)
    xc = x - mu
    var = jnp.mean(xc * xc, axis=-1, keepdims=True)
    xn = (xc * jax.lax.rsqrt(var + eps) * gamma + beta).astype(jnp.bfloat16)

    # QKV projection: one big (M, C) @ (C, 3C) matmul.
    qkv = jnp.dot(xn, wqkv, preferred_element_type=jnp.float32)        # (M, 3C)

    for h in range(num_heads):
        # Fold the softmax scale into q (touches M*hd elements, not M*M).
        q = (qkv[:, h * hd:(h + 1) * hd] * scale).astype(jnp.bfloat16)
        k = qkv[:, C + h * hd:C + (h + 1) * hd].astype(jnp.bfloat16)
        v = qkv[:, 2 * C + h * hd:2 * C + (h + 1) * hd].astype(jnp.bfloat16)

        # q @ k^T without materializing a transpose.
        s = jax.lax.dot_general(q, k, (((1,), (1,)), ((), ())),
                                preferred_element_type=jnp.float32)    # (M, M)
        if bias is not None:
            s = s + bias                                               # block-diag mask
        s = s - jnp.max(s, axis=-1, keepdims=True)
        p = jnp.exp(s)
        # TODO(synk): on v6e/v7x, if the bundle profile shows EUP-bound, do the exp in bf16.
        inv = pl.reciprocal(jnp.sum(p, axis=-1, keepdims=True), approx=True)
        p = (p * inv).astype(jnp.bfloat16)

        pv = jnp.dot(p, v, preferred_element_type=jnp.float32)         # (M, hd)
        # TODO(synk): on v5e, write two heads (128 lanes) per store so the single
        # vst slot issues unmasked stores.
        ctx_ref[:, h * hd:(h + 1) * hd] = pv.astype(jnp.bfloat16)

    # Single output projection with full K=C contraction.
    return jnp.dot(ctx_ref[...], wproj, preferred_element_type=jnp.float32) + bproj


def _pick_group(num_seqs, seq_len, max_group=16):
    """Largest divisor G of num_seqs (<= max_group) whose packed block (G*seq_len
    rows) is 8-row aligned or covers the whole array; prefer leaving >= 2 grid
    steps so both v7x TensorCores get work."""
    best = None
    for g in range(min(num_seqs, max_group), 0, -1):
        if num_seqs % g:
            continue
        if (g * seq_len) % 8 != 0 and g != num_seqs:
            continue
        if best is None:
            best = g
        if num_seqs // g >= 2:
            return g
    return best if best is not None else num_seqs


# ---------------------------------------------------------------------------
# Kernel 1: temporal LayerNorm + attention + temporal_fc + residual (fused)
# ---------------------------------------------------------------------------
def _temporal_attn_kernel(x_ref, bias_ref, g_ref, b_ref, wqkv_ref, wproj_ref,
                          bproj_ref, wtfc_ref, btfc_ref, o_ref, ctx_ref, *,
                          num_heads, scale, eps):
    x = x_ref[...].astype(jnp.float32)                                  # (M, C)
    attn = _ln_mha(x, g_ref[...], b_ref[...], wqkv_ref[...], wproj_ref[...],
                   bproj_ref[...], ctx_ref, bias=bias_ref[...],
                   num_heads=num_heads, scale=scale, eps=eps)
    # temporal_fc + residual fused here: no extra HBM round trip of the activation.
    y = jnp.dot(attn.astype(jnp.bfloat16), wtfc_ref[...],
                preferred_element_type=jnp.float32) + btfc_ref[...]
    o_ref[...] = (x + y).astype(o_ref.dtype)


def temporal_attention(xt2, gamma, beta, w_qkv, w_proj, b_proj, w_tfc, b_tfc, *,
                       num_heads, eps, seqs_per_block, seq_len):
    R, C = xt2.shape                       # R = num_seqs * seq_len
    M = seqs_per_block * seq_len
    assert R % M == 0 and C % num_heads == 0
    scale = (C // num_heads) ** (-0.5)

    # Additive block-diagonal mask keeping attention within each packed sequence.
    ids = np.arange(M) // seq_len
    bias = jnp.asarray(np.where(ids[:, None] == ids[None, :], 0.0, -1e30),
                       dtype=jnp.float32)

    kernel = functools.partial(_temporal_attn_kernel, num_heads=num_heads,
                               scale=scale, eps=eps)
    const = lambda i: (0, 0)
    # TODO(synk): on v7x, single-buffer the constant weight specs (pl.Buffered(1))
    # to reclaim VMEM headroom for larger packed blocks.
    return pl.pallas_call(
        kernel,
        out_shape=jax.ShapeDtypeStruct((R, C), jnp.bfloat16),
        grid_spec=pltpu.PrefetchScalarGridSpec(
            num_scalar_prefetch=0,
            grid=(R // M,),
            in_specs=[
                pl.BlockSpec((M, C), lambda i: (i, 0)),      # packed tokens (bf16)
                pl.BlockSpec((M, M), const),                 # block-diag bias
                pl.BlockSpec((1, C), const),                 # ln gamma
                pl.BlockSpec((1, C), const),                 # ln beta
                pl.BlockSpec((C, 3 * C), const),             # qkv weight  (bf16)
                pl.BlockSpec((C, C), const),                 # proj weight (bf16)
                pl.BlockSpec((1, C), const),                 # proj bias
                pl.BlockSpec((C, C), const),                 # temporal_fc weight (bf16)
                pl.BlockSpec((1, C), const),                 # temporal_fc bias
            ],
            out_specs=pl.BlockSpec((M, C), lambda i: (i, 0)),
            scratch_shapes=[pltpu.VMEM((M, C), jnp.bfloat16)],   # packed head ctx
        ),
        compiler_params=pltpu.CompilerParams(dimension_semantics=("parallel",)),
    )(xt2, bias, gamma, beta, w_qkv, w_proj, b_proj, w_tfc, b_tfc)


# ---------------------------------------------------------------------------
# Kernel 2: spatial LayerNorm + attention (cls concat + rearrange via BlockSpecs)
# ---------------------------------------------------------------------------
def _spatial_attn_kernel(cls_ref, x_ref, g_ref, b_ref, wqkv_ref, wproj_ref,
                         bproj_ref, otok_ref, ocls_ref, xs_ref, ctx_ref, *,
                         num_heads, scale, eps):
    # cls_ref: (1, 1, C); x_ref: (1, HW, C) strided slice of the (B, HW, T*C) view.
    # Assemble the (1+HW, C) spatial sequence (cls row + frame tokens) in VMEM.
    xs_ref[0:1, :] = cls_ref[0].astype(jnp.float32)
    xs_ref[1:, :] = x_ref[0].astype(jnp.float32)
    attn = _ln_mha(xs_ref[...], g_ref[...], b_ref[...], wqkv_ref[...],
                   wproj_ref[...], bproj_ref[...], ctx_ref, bias=None,
                   num_heads=num_heads, scale=scale, eps=eps)
    ocls_ref[0] = attn[0:1, :].astype(ocls_ref.dtype)
    otok_ref[0] = attn[1:, :].astype(otok_ref.dtype)


def spatial_attention(cls0, x_sp, gamma, beta, w_qkv, w_proj, b_proj, *,
                      num_heads, eps, T):
    B, HW, TC = x_sp.shape
    C = TC // T
    N = HW + 1
    scale = (C // num_heads) ** (-0.5)
    kernel = functools.partial(_spatial_attn_kernel, num_heads=num_heads,
                               scale=scale, eps=eps)
    const = lambda b, t: (0, 0)
    return pl.pallas_call(
        kernel,
        out_shape=(jax.ShapeDtypeStruct((B, HW, TC), jnp.bfloat16),   # per-frame tokens
                   jax.ShapeDtypeStruct((B * T, 1, C), jnp.float32)), # per-frame cls rows
        grid_spec=pltpu.PrefetchScalarGridSpec(
            num_scalar_prefetch=0,
            grid=(B, T),
            in_specs=[
                pl.BlockSpec((1, 1, C), lambda b, t: (b, 0, 0)),      # cls token
                pl.BlockSpec((1, HW, C), lambda b, t: (b, 0, t)),     # frame-t tokens (strided DMA)
                pl.BlockSpec((1, C), const),                          # ln gamma
                pl.BlockSpec((1, C), const),                          # ln beta
                pl.BlockSpec((C, 3 * C), const),                      # qkv weight  (bf16)
                pl.BlockSpec((C, C), const),                          # proj weight (bf16)
                pl.BlockSpec((1, C), const),                          # proj bias
            ],
            out_specs=(pl.BlockSpec((1, HW, C), lambda b, t: (b, 0, t)),
                       pl.BlockSpec((1, 1, C), lambda b, t: (b * T + t, 0, 0))),
            scratch_shapes=[pltpu.VMEM((N, C), jnp.float32),          # assembled sequence
                            pltpu.VMEM((N, C), jnp.bfloat16)],        # packed head ctx
        ),
        compiler_params=pltpu.CompilerParams(
            dimension_semantics=("parallel", "parallel")),
    )(cls0, x_sp, gamma, beta, w_qkv, w_proj, b_proj)


# ---------------------------------------------------------------------------
# Kernel 3: x_mid formation + LayerNorm + MLP + residual (fused)
# ---------------------------------------------------------------------------
def _ln_mlp_residual_kernel(cls_ref, xt_ref, rs_ref, g_ref, b_ref, w1_ref, b1_ref,
                            w2_ref, b2_ref, o_ref, xm_ref, *, eps):
    # Build x_mid in VMEM: row 0 = init_cls + mean(spatial cls), rows 1: = xt_new + res_sp.
    xm_ref[0:1, :] = cls_ref[0]
    xm_ref[1:, :] = xt_ref[0].astype(jnp.float32) + rs_ref[0].astype(jnp.float32)
    x_mid = xm_ref[...]                                                  # (N, C) f32

    mu = jnp.mean(x_mid, axis=-1, keepdims=True)
    xc = x_mid - mu
    var = jnp.mean(xc * xc, axis=-1, keepdims=True)
    xn = xc * jax.lax.rsqrt(var + eps) * g_ref[...] + b_ref[...]

    h = jnp.dot(xn.astype(jnp.bfloat16), w1_ref[...],
                preferred_element_type=jnp.float32) + b1_ref[...]
    # TODO(synk): nn.GELU() is exact erf; tanh approximation used here (EUP-friendly).
    h = jax.nn.gelu(h, approximate=True)
    y = jnp.dot(h.astype(jnp.bfloat16), w2_ref[...],
                preferred_element_type=jnp.float32) + b2_ref[...]
    o_ref[0] = (x_mid + y).astype(o_ref.dtype)


def ln_mlp_residual(cls_mid, xt_new, res_sp, gamma, beta, w1, b1, w2, b2, *, eps):
    B, Nm1, C = xt_new.shape
    Hd = w1.shape[1]
    kernel = functools.partial(_ln_mlp_residual_kernel, eps=eps)
    const = lambda i: (0, 0)
    # TODO(synk): for large token counts (e.g. ViT-B video ~1569 tokens, Hd=3072) tile
    # the token rows (grid (B, cdiv(N, tn))) and set vmem_limit_bytes for v7x's 64 MiB VMEM.
    return pl.pallas_call(
        kernel,
        out_shape=jax.ShapeDtypeStruct((B, Nm1 + 1, C), jnp.float32),
        grid_spec=pltpu.PrefetchScalarGridSpec(
            num_scalar_prefetch=0,
            grid=(B,),
            in_specs=[
                pl.BlockSpec((1, 1, C), lambda i: (i, 0, 0)),     # cls row of x_mid (f32)
                pl.BlockSpec((1, Nm1, C), lambda i: (i, 0, 0)),   # xt_new       (bf16)
                pl.BlockSpec((1, Nm1, C), lambda i: (i, 0, 0)),   # res_spatial  (bf16)
                pl.BlockSpec((1, C), const),                      # ln gamma
                pl.BlockSpec((1, C), const),                      # ln beta
                pl.BlockSpec((C, Hd), const),                     # fc1 weight (bf16)
                pl.BlockSpec((1, Hd), const),                     # fc1 bias
                pl.BlockSpec((Hd, C), const),                     # fc2 weight (bf16)
                pl.BlockSpec((1, C), const),                      # fc2 bias
            ],
            out_specs=pl.BlockSpec((1, Nm1 + 1, C), lambda i: (i, 0, 0)),
            scratch_shapes=[pltpu.VMEM((Nm1 + 1, C), jnp.float32)],   # x_mid
        ),
        compiler_params=pltpu.CompilerParams(dimension_semantics=("parallel",)),
    )(cls_mid, xt_new, res_sp, gamma, beta, w1, b1, w2, b2)


# ---------------------------------------------------------------------------
# Block.forward (divided_space_time) — Pallas kernels + thin JAX glue
# ---------------------------------------------------------------------------
def block_forward(x, B, T, W, p, *, num_heads):
    del W  # the (h w) split does not affect the token layout used here
    _, Ntot, C = x.shape
    HW = (Ntot - 1) // T
    bf16 = jnp.bfloat16

    cls0 = x[:, 0:1, :]                                   # (B, 1, C) f32 (tiny)
    x_tok = x[:, 1:, :].astype(bf16)                      # (B, HW*T, C) bf16 activations

    # --- temporal attention + temporal_fc + residual (kernel 1, packed sequences)
    S = B * HW
    G = _pick_group(S, T)
    xt2 = x_tok.reshape(S * T, C)                         # free view: '(b h w) t m' rows
    xt_new = temporal_attention(
        xt2, p["g_t"], p["b_t"], p["wqkv_t"], p["wproj_t"], p["bproj_t"],
        p["w_tfc"], p["b_tfc"], num_heads=num_heads, eps=1e-5,
        seqs_per_block=G, seq_len=T)
    xt_new = xt_new.reshape(B, HW * T, C)                 # free view back

    # --- spatial attention (kernel 2): 'b (h w t) m -> (b t) (h w) m' done by the
    #     BlockSpec on the (B, HW, T*C) view — no XLA transpose / concat pass.
    x_sp = x_tok.reshape(B, HW, T * C)                    # free view
    res_tok, res_cls = spatial_attention(
        cls0, x_sp, p["g1"], p["b1"], p["wqkv_s"], p["wproj_s"], p["bproj_s"],
        num_heads=num_heads, eps=1e-6, T=T)
    res_sp = res_tok.reshape(B, HW * T, C)                # free view back
    cls_mid = cls0 + jnp.mean(res_cls.reshape(B, T, C), axis=1, keepdims=True)

    # --- LN + MLP + residual, x_mid formed in-kernel (kernel 3).
    return ln_mlp_residual(cls_mid, xt_new, res_sp, p["g2"], p["b2"],
                           p["w1"], p["b1m"], p["w2"], p["b2m"], eps=1e-6)


def prepare_params(p):
    """One-time bf16 cast of all weight matrices (never per forward call)."""
    q = dict(p)
    for k in ("wqkv_t", "wproj_t", "w_tfc", "wqkv_s", "wproj_s", "w1", "w2"):
        q[k] = p[k].astype(jnp.bfloat16)
    return q


# ---------------------------------------------------------------------------
# Pure-JAX reference mirroring the PyTorch Block.forward
# ---------------------------------------------------------------------------
def _layernorm_ref(x, g, b, eps):
    mu = x.mean(-1, keepdims=True)
    xc = x - mu
    var = (xc * xc).mean(-1, keepdims=True)
    return xc * jax.lax.rsqrt(var + eps) * g + b


def _attention_ref(x, w_qkv, w_proj, b_proj, num_heads):
    Bx, N, C = x.shape
    hd = C // num_heads
    scale = hd ** (-0.5)
    qkv = x @ w_qkv
    qkv = qkv.reshape(Bx, N, 3, num_heads, hd).transpose(2, 0, 3, 1, 4)
    q, k, v = qkv[0], qkv[1], qkv[2]
    attn = jnp.einsum("bhid,bhjd->bhij", q, k) * scale
    attn = jax.nn.softmax(attn, axis=-1)
    out = jnp.einsum("bhij,bhjd->bhid", attn, v)
    out = out.transpose(0, 2, 1, 3).reshape(Bx, N, C)
    return out @ w_proj + b_proj


def block_reference(x, B, T, W, p, *, num_heads):
    _, Ntot, C = x.shape
    nst = (Ntot - 1) // T
    Hs = nst // W
    xt = x[:, 1:, :].reshape(B, Hs * W, T, C).reshape(B * Hs * W, T, C)
    rt = _attention_ref(_layernorm_ref(xt, p["g_t"], p["b_t"], 1e-5),
                        p["wqkv_t"], p["wproj_t"], p["bproj_t"], num_heads)
    rt = rt.reshape(B, Hs * W, T, C).reshape(B, Hs * W * T, C)
    rt = rt @ p["w_tfc"] + p["b_tfc"]
    xt_new = x[:, 1:, :] + rt
    init_cls = x[:, 0:1, :]
    cls_rep = jnp.tile(init_cls, (1, T, 1)).reshape(B * T, 1, C)
    xs = x[:, 1:, :].reshape(B, Hs * W, T, C).transpose(0, 2, 1, 3).reshape(B * T, Hs * W, C)
    xs = jnp.concatenate([cls_rep, xs], axis=1)
    rs = _attention_ref(_layernorm_ref(xs, p["g1"], p["b1"], 1e-6),
                        p["wqkv_s"], p["wproj_s"], p["bproj_s"], num_heads)
    cls_t = rs[:, 0, :].reshape(B, T, C).mean(axis=1, keepdims=True)
    rsp = rs[:, 1:, :].reshape(B, T, Hs * W, C).transpose(0, 2, 1, 3).reshape(B, Hs * W * T, C)
    x_mid = (jnp.concatenate([init_cls, xt_new], axis=1)
             + jnp.concatenate([cls_t, rsp], axis=1))
    h = _layernorm_ref(x_mid, p["g2"], p["b2"], 1e-6) @ p["w1"] + p["b1m"]
    h = jax.nn.gelu(h, approximate=True)
    return x_mid + h @ p["w2"] + p["b2m"]


def init_params(key, C, mlp_hidden):
    ks = jax.random.split(key, 18)
    n = lambda k, shape, s: s * jax.random.normal(k, shape, jnp.float32)
    return {
        "g_t": 1.0 + n(ks[0], (1, C), 0.1), "b_t": n(ks[1], (1, C), 0.05),
        "wqkv_t": n(ks[2], (C, 3 * C), 0.05), "wproj_t": n(ks[3], (C, C), 0.05),
        "bproj_t": n(ks[4], (1, C), 0.05),
        "w_tfc": n(ks[5], (C, C), 0.05), "b_tfc": n(ks[6], (1, C), 0.05),
        "g1": 1.0 + n(ks[7], (1, C), 0.1), "b1": n(ks[8], (1, C), 0.05),
        "wqkv_s": n(ks[9], (C, 3 * C), 0.05), "wproj_s": n(ks[10], (C, C), 0.05),
        "bproj_s": n(ks[11], (1, C), 0.05),
        "g2": 1.0 + n(ks[12], (1, C), 0.1), "b2": n(ks[13], (1, C), 0.05),
        "w1": n(ks[14], (C, mlp_hidden), 0.05), "b1m": n(ks[15], (1, mlp_hidden), 0.05),
        "w2": n(ks[16], (mlp_hidden, C), 0.05), "b2m": n(ks[17], (1, C), 0.05),
    }


if __name__ == "__main__":
    # Small shapes consistent with the module: B=2 clips, T=2 frames, 2x2 spatial
    # patches, C=128 channels (multiple of 128 lanes), 2 heads (head_dim=64).
    B, T, Hs, W = 2, 2, 2, 2
    C, num_heads = 128, 2
    Ntot = 1 + Hs * W * T   # cls token + spatial*temporal tokens = 9

    key = jax.random.PRNGKey(0)
    kx, kp = jax.random.split(key)
    x = jax.random.normal(kx, (B, Ntot, C), dtype=jnp.float32)
    params = init_params(kp, C, mlp_hidden=4 * C)
    params_dev = prepare_params(params)   # one-time bf16 weight cast

    out = block_forward(x, B, T, W, params_dev, num_heads=num_heads)
    out = jax.block_until_ready(out)

    ref = block_reference(x, B, T, W, params, num_heads=num_heads)
    assert out.shape == (B, Ntot, C)
    # bf16 activations + bf16 MXU operands + approx reciprocal vs f32 reference
    # -> loose tolerance (Dropout/DropPath are identities at inference).
    assert jnp.allclose(out, ref, atol=7.5e-2, rtol=7.5e-2), "mismatch vs reference"

    print("KERNEL_OK")
</pallas_src>

<mosaic_0001>
module attributes {stable_mosaic.version = 11 : i64} {
  func.func @_temporal_attn_kernel(%arg0: i32, %arg1: memref<8x128xbf16, #tpu.memory_space<vmem>>, %arg2: memref<8x8xf32, #tpu.memory_space<vmem>>, %arg3: memref<1x128xf32, #tpu.memory_space<vmem>>, %arg4: memref<1x128xf32, #tpu.memory_space<vmem>>, %arg5: memref<128x384xbf16, #tpu.memory_space<vmem>>, %arg6: memref<128x128xbf16, #tpu.memory_space<vmem>>, %arg7: memref<1x128xf32, #tpu.memory_space<vmem>>, %arg8: memref<128x128xbf16, #tpu.memory_space<vmem>>, %arg9: memref<1x128xf32, #tpu.memory_space<vmem>>, %arg10: memref<8x128xbf16, #tpu.memory_space<vmem>>, %arg11: memref<8x128xbf16, #tpu.memory_space<vmem>>) attributes {dimension_semantics = [#tpu.dimension_semantics<parallel>], iteration_bounds = array<i64: 2>, scalar_prefetch = 0 : i64, scratch_operands = 1 : i64, tpu.core_type = #tpu.core_type<tc>, window_params = [{transform_indices = @transform_0, window_bounds = array<i64: 8, 128>}, {pipeline_mode = #tpu.pipeline_mode<synchronous>, transform_indices = @transform_1, window_bounds = array<i64: 8, 8>}, {pipeline_mode = #tpu.pipeline_mode<synchronous>, transform_indices = @transform_2, window_bounds = array<i64: 1, 128>}, {pipeline_mode = #tpu.pipeline_mode<synchronous>, transform_indices = @transform_3, window_bounds = array<i64: 1, 128>}, {pipeline_mode = #tpu.pipeline_mode<synchronous>, transform_indices = @transform_4, window_bounds = array<i64: 128, 384>}, {pipeline_mode = #tpu.pipeline_mode<synchronous>, transform_indices = @transform_5, window_bounds = array<i64: 128, 128>}, {pipeline_mode = #tpu.pipeline_mode<synchronous>, transform_indices = @transform_6, window_bounds = array<i64: 1, 128>}, {pipeline_mode = #tpu.pipeline_mode<synchronous>, transform_indices = @transform_7, window_bounds = array<i64: 128, 128>}, {pipeline_mode = #tpu.pipeline_mode<synchronous>, transform_indices = @transform_8, window_bounds = array<i64: 1, 128>}, {transform_indices = @transform_9, window_bounds = array<i64: 8, 128>}]} {
    %c0 = arith.constant 0 : index
    %c0_0 = arith.constant 0 : index
    %0 = vector.load %arg1[%c0, %c0_0] : memref<8x128xbf16, #tpu.memory_space<vmem>>, vector<8x128xbf16>
    %1 = arith.extf %0 : vector<8x128xbf16> to vector<8x128xf32>
    %c0_1 = arith.constant 0 : index
    %c0_2 = arith.constant 0 : index
    %2 = vector.load %arg3[%c0_1, %c0_2] : memref<1x128xf32, #tpu.memory_space<vmem>>, vector<1x128xf32>
    %c0_3 = arith.constant 0 : index
    %c0_4 = arith.constant 0 : index
    %3 = vector.load %arg4[%c0_3, %c0_4] : memref<1x128xf32, #tpu.memory_space<vmem>>, vector<1x128xf32>
    %c0_5 = arith.constant 0 : index
    %c0_6 = arith.constant 0 : index
    %4 = vector.load %arg5[%c0_5, %c0_6] : memref<128x384xbf16, #tpu.memory_space<vmem>>, vector<128x384xbf16>
    %c0_7 = arith.constant 0 : index
    %c0_8 = arith.constant 0 : index
    %5 = vector.load %arg6[%c0_7, %c0_8] : memref<128x128xbf16, #tpu.memory_space<vmem>>, vector<128x128xbf16>
    %c0_9 = arith.constant 0 : index
    %c0_10 = arith.constant 0 : index
    %6 = vector.load %arg7[%c0_9, %c0_10] : memref<1x128xf32, #tpu.memory_space<vmem>>, vector<1x128xf32>
    %c0_11 = arith.constant 0 : index
    %c0_12 = arith.constant 0 : index
    %7 = vector.load %arg2[%c0_11, %c0_12] : memref<8x8xf32, #tpu.memory_space<vmem>>, vector<8x8xf32>
    %cst = arith.constant dense<0.000000e+00> : vector<8xf32>
    %8 = vector.multi_reduction <add>, %1, %cst [1] : vector<8x128xf32> to vector<8xf32>
    %9 = vector.shape_cast %8 : vector<8xf32> to vector<8x1xf32>
    %cst_13 = arith.constant 1.280000e+02 : f32
    %10 = vector.broadcast %cst_13 : f32 to vector<8x1xf32>
    %11 = arith.divf %9, %10 : vector<8x1xf32>
    %12 = vector.broadcast %11 : vector<8x1xf32> to vector<8x128xf32>
    %13 = arith.subf %1, %12 : vector<8x128xf32>
    %14 = arith.mulf %13, %13 : vector<8x128xf32>
    %cst_14 = arith.constant dense<0.000000e+00> : vector<8xf32>
    %15 = vector.multi_reduction <add>, %14, %cst_14 [1] : vector<8x128xf32> to vector<8xf32>
    %16 = vector.shape_cast %15 : vector<8xf32> to vector<8x1xf32>
    %cst_15 = arith.constant 1.280000e+02 : f32
    %17 = vector.broadcast %cst_15 : f32 to vector<8x1xf32>
    %18 = arith.divf %16, %17 : vector<8x1xf32>
    %cst_16 = arith.constant 9.99999974E-6 : f32
    %19 = vector.broadcast %cst_16 : f32 to vector<8x1xf32>
    %20 = arith.addf %18, %19 : vector<8x1xf32>
    %21 = math.rsqrt %20 : vector<8x1xf32>
    %22 = vector.broadcast %21 : vector<8x1xf32> to vector<8x128xf32>
    %23 = arith.mulf %13, %22 : vector<8x128xf32>
    %24 = vector.broadcast %2 : vector<1x128xf32> to vector<8x128xf32>
    %25 = arith.mulf %23, %24 : vector<8x128xf32>
    %26 = vector.broadcast %3 : vector<1x128xf32> to vector<8x128xf32>
    %27 = arith.addf %25, %26 : vector<8x128xf32>
    %28 = arith.truncf %27 : vector<8x128xf32> to vector<8x128xbf16>
    %cst_17 = arith.constant dense<0.000000e+00> : vector<8x384xf32>
    %29 = tpu.matmul %28, %4, %cst_17 {dimension_numbers = #tpu.dot_dimension_numbers<[1], [0], [0], [1], [0, 0, 1, 1], [], []>} : vector<8x128xbf16>, vector<128x384xbf16>, vector<8x384xf32> -> vector<8x384xf32>
    %30 = vector.extract_strided_slice %29 {offsets = [0, 0], sizes = [8, 64], strides = [1, 1]} : vector<8x384xf32> to vector<8x64xf32>
    %cst_18 = arith.constant 1.250000e-01 : f32
    %31 = vector.broadcast %cst_18 : f32 to vector<8x64xf32>
    %32 = arith.mulf %30, %31 : vector<8x64xf32>
    %33 = arith.truncf %32 : vector<8x64xf32> to vector<8x64xbf16>
    %34 = vector.extract_strided_slice %29 {offsets = [0, 128], sizes = [8, 64], strides = [1, 1]} : vector<8x384xf32> to vector<8x64xf32>
    %35 = arith.truncf %34 : vector<8x64xf32> to vector<8x64xbf16>
    %36 = vector.extract_strided_slice %29 {offsets = [0, 256], sizes = [8, 64], strides = [1, 1]} : vector<8x384xf32> to vector<8x64xf32>
    %37 = arith.truncf %36 : vector<8x64xf32> to vector<8x64xbf16>
    %cst_19 = arith.constant dense<0.000000e+00> : vector<8x8xf32>
    %38 = tpu.matmul %33, %35, %cst_19 {dimension_numbers = #tpu.dot_dimension_numbers<[1], [1], [0], [0], [0, 0, 1, 0], [], []>} : vector<8x64xbf16>, vector<8x64xbf16>, vector<8x8xf32> -> vector<8x8xf32>
    %39 = arith.addf %38, %7 : vector<8x8xf32>
    %cst_20 = arith.constant dense<0xFF800000> : vector<8xf32>
    %40 = vector.multi_reduction <maximumf>, %39, %cst_20 [1] : vector<8x8xf32> to vector<8xf32>
    %41 = vector.shape_cast %40 : vector<8xf32> to vector<8x1xf32>
    %42 = vector.broadcast %41 : vector<8x1xf32> to vector<8x8xf32>
    %43 = arith.subf %39, %42 : vector<8x8xf32>
    %44 = math.exp %43 : vector<8x8xf32>
    %cst_21 = arith.constant dense<0.000000e+00> : vector<8xf32>
    %45 = vector.multi_reduction <add>, %44, %cst_21 [1] : vector<8x8xf32> to vector<8xf32>
    %46 = vector.shape_cast %45 : vector<8xf32> to vector<8x1xf32>
    %47 = tpu.reciprocal %46 {approx = true} : vector<8x1xf32> -> vector<8x1xf32>
    %48 = vector.broadcast %47 : vector<8x1xf32> to vector<8x8xf32>
    %49 = arith.mulf %44, %48 : vector<8x8xf32>
    %50 = arith.truncf %49 : vector<8x8xf32> to vector<8x8xbf16>
    %cst_22 = arith.constant dense<0.000000e+00> : vector<8x64xf32>
    %51 = tpu.matmul %50, %37, %cst_22 {dimension_numbers = #tpu.dot_dimension_numbers<[1], [0], [0], [1], [0, 0, 1, 1], [], []>} : vector<8x8xbf16>, vector<8x64xbf16>, vector<8x64xf32> -> vector<8x64xf32>
    %52 = arith.truncf %51 : vector<8x64xf32> to vector<8x64xbf16>
    %c0_23 = arith.constant 0 : index
    %c0_24 = arith.constant 0 : index
    %53 = vector.load %arg11[%c0_23, %c0_24] : memref<8x128xbf16, #tpu.memory_space<vmem>>, vector<8x64xbf16>
    tpu.vector_store %arg11[%c0_23, %c0_24], %52 {strides = array<i32>} : memref<8x128xbf16, #tpu.memory_space<vmem>>, vector<8x64xbf16>,
    %54 = vector.extract_strided_slice %29 {offsets = [0, 64], sizes = [8, 64], strides = [1, 1]} : vector<8x384xf32> to vector<8x64xf32>
    %cst_25 = arith.constant 1.250000e-01 : f32
    %55 = vector.broadcast %cst_25 : f32 to vector<8x64xf32>
    %56 = arith.mulf %54, %55 : vector<8x64xf32>
    %57 = arith.truncf %56 : vector<8x64xf32> to vector<8x64xbf16>
    %58 = vector.extract_strided_slice %29 {offsets = [0, 192], sizes = [8, 64], strides = [1, 1]} : vector<8x384xf32> to vector<8x64xf32>
    %59 = arith.truncf %58 : vector<8x64xf32> to vector<8x64xbf16>
    %60 = vector.extract_strided_slice %29 {offsets = [0, 320], sizes = [8, 64], strides = [1, 1]} : vector<8x384xf32> to vector<8x64xf32>
    %61 = arith.truncf %60 : vector<8x64xf32> to vector<8x64xbf16>
    %cst_26 = arith.constant dense<0.000000e+00> : vector<8x8xf32>
    %62 = tpu.matmul %57, %59, %cst_26 {dimension_numbers = #tpu.dot_dimension_numbers<[1], [1], [0], [0], [0, 0, 1, 0], [], []>} : vector<8x64xbf16>, vector<8x64xbf16>, vector<8x8xf32> -> vector<8x8xf32>
    %63 = arith.addf %62, %7 : vector<8x8xf32>
    %cst_27 = arith.constant dense<0xFF800000> : vector<8xf32>
    %64 = vector.multi_reduction <maximumf>, %63, %cst_27 [1] : vector<8x8xf32> to vector<8xf32>
    %65 = vector.shape_cast %64 : vector<8xf32> to vector<8x1xf32>
    %66 = vector.broadcast %65 : vector<8x1xf32> to vector<8x8xf32>
    %67 = arith.subf %63, %66 : vector<8x8xf32>
    %68 = math.exp %67 : vector<8x8xf32>
    %cst_28 = arith.constant dense<0.000000e+00> : vector<8xf32>
    %69 = vector.multi_reduction <add>, %68, %cst_28 [1] : vector<8x8xf32> to vector<8xf32>
    %70 = vector.shape_cast %69 : vector<8xf32> to vector<8x1xf32>
    %71 = tpu.reciprocal %70 {approx = true} : vector<8x1xf32> -> vector<8x1xf32>
    %72 = vector.broadcast %71 : vector<8x1xf32> to vector<8x8xf32>
    %73 = arith.mulf %68, %72 : vector<8x8xf32>
    %74 = arith.truncf %73 : vector<8x8xf32> to vector<8x8xbf16>
    %cst_29 = arith.constant dense<0.000000e+00> : vector<8x64xf32>
    %75 = tpu.matmul %74, %61, %cst_29 {dimension_numbers = #tpu.dot_dimension_numbers<[1], [0], [0], [1], [0, 0, 1, 1], [], []>} : vector<8x8xbf16>, vector<8x64xbf16>, vector<8x64xf32> -> vector<8x64xf32>
    %76 = arith.truncf %75 : vector<8x64xf32> to vector<8x64xbf16>
    %c0_30 = arith.constant 0 : index
    %c64 = arith.constant 64 : index
    %77 = vector.load %arg11[%c0_30, %c64] : memref<8x128xbf16, #tpu.memory_space<vmem>>, vector<8x64xbf16>
    tpu.vector_store %arg11[%c0_30, %c64], %76 {strides = array<i32>} : memref<8x128xbf16, #tpu.memory_space<vmem>>, vector<8x64xbf16>,
    %c0_31 = arith.constant 0 : index
    %c0_32 = arith.constant 0 : index
    %78 = vector.load %arg11[%c0_31, %c0_32] : memref<8x128xbf16, #tpu.memory_space<vmem>>, vector<8x128xbf16>
    %cst_33 = arith.constant dense<0.000000e+00> : vector<8x128xf32>
    %79 = tpu.matmul %78, %5, %cst_33 {dimension_numbers = #tpu.dot_dimension_numbers<[1], [0], [0], [1], [0, 0, 1, 1], [], []>} : vector<8x128xbf16>, vector<128x128xbf16>, vector<8x128xf32> -> vector<8x128xf32>
    %80 = vector.broadcast %6 : vector<1x128xf32> to vector<8x128xf32>
    %81 = arith.addf %79, %80 : vector<8x128xf32>
    %82 = arith.truncf %81 : vector<8x128xf32> to vector<8x128xbf16>
    %c0_34 = arith.constant 0 : index
    %c0_35 = arith.constant 0 : index
    %83 = vector.load %arg8[%c0_34, %c0_35] : memref<128x128xbf16, #tpu.memory_space<vmem>>, vector<128x128xbf16>
    %cst_36 = arith.constant dense<0.000000e+00> : vector<8x128xf32>
    %84 = tpu.matmul %82, %83, %cst_36 {dimension_numbers = #tpu.dot_dimension_numbers<[1], [0], [0], [1], [0, 0, 1, 1], [], []>} : vector<8x128xbf16>, vector<128x128xbf16>, vector<8x128xf32> -> vector<8x128xf32>
    %c0_37 = arith.constant 0 : index
    %c0_38 = arith.constant 0 : index
    %85 = vector.load %arg9[%c0_37, %c0_38] : memref<1x128xf32, #tpu.memory_space<vmem>>, vector<1x128xf32>
    %86 = vector.broadcast %85 : vector<1x128xf32> to vector<8x128xf32>
    %87 = arith.addf %84, %86 : vector<8x128xf32>
    %88 = arith.addf %1, %87 : vector<8x128xf32>
    %89 = arith.truncf %88 : vector<8x128xf32> to vector<8x128xbf16>
    %c0_39 = arith.constant 0 : index
    %c0_40 = arith.constant 0 : index
    %90 = vector.load %arg10[%c0_39, %c0_40] : memref<8x128xbf16, #tpu.memory_space<vmem>>, vector<8x128xbf16>
    tpu.vector_store %arg10[%c0_39, %c0_40], %89 {strides = array<i32>} : memref<8x128xbf16, #tpu.memory_space<vmem>>, vector<8x128xbf16>,
    return
  }
  func.func @transform_0(%arg0: i32) -> (i32, i32) {
    %c0_i32 = arith.constant 0 : i32
    %c0_i32_0 = arith.constant 0 : i32
    return %arg0, %c0_i32 : i32, i32
  }
  func.func @transform_1(%arg0: i32) -> (i32, i32) {
    %c0_i32 = arith.constant 0 : i32
    %c0_i32_0 = arith.constant 0 : i32
    %c0_i32_1 = arith.constant 0 : i32
    return %c0_i32, %c0_i32_0 : i32, i32
  }
  func.func @transform_2(%arg0: i32) -> (i32, i32) {
    %c0_i32 = arith.constant 0 : i32
    %c0_i32_0 = arith.constant 0 : i32
    %c0_i32_1 = arith.constant 0 : i32
    return %c0_i32, %c0_i32_0 : i32, i32
  }
  func.func @transform_3(%arg0: i32) -> (i32, i32) {
    %c0_i32 = arith.constant 0 : i32
    %c0_i32_0 = arith.constant 0 : i32
    %c0_i32_1 = arith.constant 0 : i32
    return %c0_i32, %c0_i32_0 : i32, i32
  }
  func.func @transform_4(%arg0: i32) -> (i32, i32) {
    %c0_i32 = arith.constant 0 : i32
    %c0_i32_0 = arith.constant 0 : i32
    %c0_i32_1 = arith.constant 0 : i32
    return %c0_i32, %c0_i32_0 : i32, i32
  }
  func.func @transform_5(%arg0: i32) -> (i32, i32) {
    %c0_i32 = arith.constant 0 : i32
    %c0_i32_0 = arith.constant 0 : i32
    %c0_i32_1 = arith.constant 0 : i32
    return %c0_i32, %c0_i32_0 : i32, i32
  }
  func.func @transform_6(%arg0: i32) -> (i32, i32) {
    %c0_i32 = arith.constant 0 : i32
    %c0_i32_0 = arith.constant 0 : i32
    %c0_i32_1 = arith.constant 0 : i32
    return %c0_i32, %c0_i32_0 : i32, i32
  }
  func.func @transform_7(%arg0: i32) -> (i32, i32) {
    %c0_i32 = arith.constant 0 : i32
    %c0_i32_0 = arith.constant 0 : i32
    %c0_i32_1 = arith.constant 0 : i32
    return %c0_i32, %c0_i32_0 : i32, i32
  }
  func.func @transform_8(%arg0: i32) -> (i32, i32) {
    %c0_i32 = arith.constant 0 : i32
    %c0_i32_0 = arith.constant 0 : i32
    %c0_i32_1 = arith.constant 0 : i32
    return %c0_i32, %c0_i32_0 : i32, i32
  }
  func.func @transform_9(%arg0: i32) -> (i32, i32) {
    %c0_i32 = arith.constant 0 : i32
    %c0_i32_0 = arith.constant 0 : i32
    return %arg0, %c0_i32 : i32, i32
  }
}

</mosaic_0001>

<llo_original>
// kernel: tpu_custom_call.1
$region0: #{tpu_custom_call.1}
  #allocation0 [shape = 'u32[]', space=smem, size = 0x4, offset = 0x4, fixed_abs, tag = 'smem constant byte address 0x4 - core index']
  #allocation1 [shape = 'u32[144,128]{1,0:T(1,128)}', space=vmem, size = 0x12000, scoped, tag = 'internal scratch']
  #allocation2 [shape = 'bf16[8,128]{1,0:T(8,128)(2,1)}', space=vmem, size = 0x800, scoped, tag = 'scratch operand']
  %s0 = inlined_call_operand.hbm [shape: bf16[16,128], index: 0, kind: input, shape index: {}]
  %s1 = inlined_call_operand.hbm [shape: f32[8,8], index: 1, kind: input, shape index: {}]
  %s2 = inlined_call_operand.vmem [shape: f32[1,128], index: 2, kind: input, shape index: {}]
  %s3 = inlined_call_operand.vmem [shape: f32[1,128], index: 3, kind: input, shape index: {}]
  %s4 = inlined_call_operand.hbm [shape: bf16[128,384], index: 4, kind: input, shape index: {}]
  %s5 = inlined_call_operand.hbm [shape: bf16[128,128], index: 5, kind: input, shape index: {}]
  %s6 = inlined_call_operand.vmem [shape: f32[1,128], index: 6, kind: input, shape index: {}]
  %s7 = inlined_call_operand.hbm [shape: bf16[128,128], index: 7, kind: input, shape index: {}]
  %s8 = inlined_call_operand.vmem [shape: f32[1,128], index: 8, kind: input, shape index: {}]
  %s9 = inlined_call_operand.hbm [shape: bf16[16,128], index: 9, kind: output, shape index: {}]
  %s10 = sld [smem:[#allocation0]]
  $region89: #{tpu_custom_call.1} parent=0
    _
  %s12 = ssub.s32 1, %s10
  %s13 = scalar_select 0, %s12, %s10
  $region1: #{tpu_custom_call.1} parent=0
    #allocation3 [shape = 'u8[4096]{0}', space=vmem, size = 0x1000, scoped, tag = 'input window, operand 0']
    #allocation4 [shape = 's32[2]{0}', space=sflag, size = 0x8, scoped, tag = 'scoped memory for tpu_custom_call.1']
    #allocation5 [shape = 's32[2]{0}', space=sflag, size = 0x8, scoped, tag = 'scoped memory for tpu_custom_call.1']
    #allocation6 [shape = 'u8[4096]{0}', space=vmem, size = 0x1000, scoped, tag = 'input window, operand 1, single buffered']
    #allocation7 [shape = 's32[1]{0}', space=sflag, size = 0x4, scoped, tag = 'scoped memory for tpu_custom_call.1']
    #allocation8 [shape = 'u8[98304]{0}', space=vmem, size = 0x18000, scoped, tag = 'input window, operand 4, single buffered']
    #allocation9 [shape = 'u8[32768]{0}', space=vmem, size = 0x8000, scoped, tag = 'input window, operand 5, single buffered']
    #allocation10 [shape = 's32[1]{0}', space=sflag, size = 0x4, scoped, tag = 'scoped memory for tpu_custom_call.1']
    #allocation11 [shape = 'u8[32768]{0}', space=vmem, size = 0x8000, scoped, tag = 'input window, operand 7, single buffered']
    #allocation12 [shape = 'u8[4096]{0}', space=vmem, size = 0x1000, scoped, tag = 'output window, operand 0']
    %14 = vsyncpa [#allocation4], 0
    %s15 = scalar_lea.sflag [#allocation4], 1
    %16 = vsyncpa %s15, 0
    %17 = vsyncpa [#allocation7], 0
    %18 = vsyncpa [#allocation10], 0
    %19 = vsyncpa [#allocation5], 0
    %s20 = scalar_lea.sflag [#allocation5], 1
    %21 = vsyncpa %s20, 0
    loop: start=0, step=1, limit=4
    $region2: #{tpu_custom_call.1} parent=1 // loop_pre_header
      _
    $region3: #{tpu_custom_call.1} parent=1 // loop_header
      %s23 = sphi 0, %s27
      %p24 = scmp.ge.s32.totalorder %s23, 4
      %s33 = sphi 0, %s35
      %s36 = sphi 0, %s33
      %s37 = sphi 0, %s36
      %s53 = sphi 0, %s37
      %s57 = sphi 0, %s57
      %s59 = sphi 0, %s57
      %s60 = sphi 0, %s59
      %s74 = sphi 0, %s60
      %s78 = sphi 0, %s78
      %s80 = sphi 0, %s78
      %s81 = sphi 0, %s80
      %s95 = sphi 0, %s81
      %s99 = sphi 0, %s99
      %s101 = sphi 0, %s99
      %s102 = sphi 0, %s101
      %s116 = sphi 0, %s102
      %s120 = sphi 0, %s120
      %s122 = sphi 0, %s120
      %s123 = sphi 0, %s122
      %s137 = sphi 0, %s123
      %s141 = sphi 0, %s141
      %s143 = sphi 0, %s141
      %s144 = sphi 0, %s143
      %s158 = sphi 0, %s144
      %s162 = sphi 0, %s162
      %s164 = sphi 0, %s162
      %s165 = sphi 0, %s164
      %s179 = sphi 0, %s165
      %s183 = sphi 0, %s183
      %s185 = sphi 0, %s183
      %s186 = sphi 0, %s185
      %s200 = sphi 0, %s186
      %s204 = sphi 0, %s204
      %s206 = sphi 0, %s204
      %s207 = sphi 0, %s206
      %s221 = sphi 0, %s207
      %s227 = sphi 0, %s229
      %s230 = sphi 0, %s227
      %s231 = sphi 0, %s230
      %s247 = sphi 0, %s231
    $region4: #{tpu_custom_call.1} parent=1 // loop_header_branch
      %26 = sbr.rel (%p24) target = $region8
    $region5: #{tpu_custom_call.1} parent=1 // loop_body
      %s28 = ssub.s32 %s23, 1
      %s29 = ssub.s32 %s23, 2
      %s30 = sadd.s32 %s23, 1
      %s31 = ssub.s32 %s23, %s30
      %p32 = scmp.eq.s32.totalorder %s31, 0
      %s34 = sadd.s32 %s33, 1
      %s35 = scalar_select %p32, %s33, %s34
      %p38 = pneg %p32
      %p39 = scmp.eq.s32.totalorder %s23, 1
      %p40 = por %p38, %p39
      %p41 = scmp.ne.s32.totalorder %s33, %s36
      %p42 = scmp.eq.s32.totalorder %s23, 0
      %p43 = por %p41, %p42
      %p44 = scmp.ne.s32.totalorder %s33, %s36
      %p45 = scmp.eq.s32.totalorder %s28, 1
      %p46 = por %p44, %p45
      %p47 = scmp.ne.s32.totalorder %s36, %s37
      %p48 = scmp.eq.s32.totalorder %s28, 0
      %p49 = por %p47, %p48
      %p50 = scmp.ne.s32.totalorder %s36, %s37
      %p51 = scmp.eq.s32.totalorder %s29, 1
      %p52 = por %p50, %p51
      %p54 = scmp.ne.s32.totalorder %s37, %s53
      %p55 = scmp.eq.s32.totalorder %s29, 0
      %p56 = por %p54, %p55
      %s58 = sadd.s32 %s57, 1
      %p61 = scmp.eq.s32.totalorder %s23, 1
      %p62 = scmp.ne.s32.totalorder %s57, %s59
      %p63 = scmp.eq.s32.totalorder %s23, 0
      %p64 = por %p62, %p63
      %p65 = scmp.ne.s32.totalorder %s57, %s59
      %p66 = scmp.eq.s32.totalorder %s28, 1
      %p67 = por %p65, %p66
      %p68 = scmp.ne.s32.totalorder %s59, %s60
      %p69 = scmp.eq.s32.totalorder %s28, 0
      %p70 = por %p68, %p69
      %p71 = scmp.ne.s32.totalorder %s59, %s60
      %p72 = scmp.eq.s32.totalorder %s29, 1
      %p73 = por %p71, %p72
      %p75 = scmp.ne.s32.totalorder %s60, %s74
      %p76 = scmp.eq.s32.totalorder %s29, 0
      %p77 = por %p75, %p76
      %s79 = sadd.s32 %s78, 1
      %p82 = scmp.eq.s32.totalorder %s23, 1
      %p83 = scmp.ne.s32.totalorder %s78, %s80
      %p84 = scmp.eq.s32.totalorder %s23, 0
      %p85 = por %p83, %p84
      %p86 = scmp.ne.s32.totalorder %s78, %s80
      %p87 = scmp.eq.s32.totalorder %s28, 1
      %p88 = por %p86, %p87
      %p89 = scmp.ne.s32.totalorder %s80, %s81
      %p90 = scmp.eq.s32.totalorder %s28, 0
      %p91 = por %p89, %p90
      %p92 = scmp.ne.s32.totalorder %s80, %s81
      %p93 = scmp.eq.s32.totalorder %s29, 1
      %p94 = por %p92, %p93
      %p96 = scmp.ne.s32.totalorder %s81, %s95
      %p97 = scmp.eq.s32.totalorder %s29, 0
      %p98 = por %p96, %p97
      %s100 = sadd.s32 %s99, 1
      %p103 = scmp.eq.s32.totalorder %s23, 1
      %p104 = scmp.ne.s32.totalorder %s99, %s101
      %p105 = scmp.eq.s32.totalorder %s23, 0
      %p106 = por %p104, %p105
      %p107 = scmp.ne.s32.totalorder %s99, %s101
      %p108 = scmp.eq.s32.totalorder %s28, 1
      %p109 = por %p107, %p108
      %p110 = scmp.ne.s32.totalorder %s101, %s102
      %p111 = scmp.eq.s32.totalorder %s28, 0
      %p112 = por %p110, %p111
      %p113 = scmp.ne.s32.totalorder %s101, %s102
      %p114 = scmp.eq.s32.totalorder %s29, 1
      %p115 = por %p113, %p114
      %p117 = scmp.ne.s32.totalorder %s102, %s116
      %p118 = scmp.eq.s32.totalorder %s29, 0
      %p119 = por %p117, %p118
      %s121 = sadd.s32 %s120, 1
      %p124 = scmp.eq.s32.totalorder %s23, 1
      %p125 = scmp.ne.s32.totalorder %s120, %s122
      %p126 = scmp.eq.s32.totalorder %s23, 0
      %p127 = por %p125, %p126
      %p128 = scmp.ne.s32.totalorder %s120, %s122
      %p129 = scmp.eq.s32.totalorder %s28, 1
      %p130 = por %p128, %p129
      %p131 = scmp.ne.s32.totalorder %s122, %s123
      %p132 = scmp.eq.s32.totalorder %s28, 0
      %p133 = por %p131, %p132
      %p134 = scmp.ne.s32.totalorder %s122, %s123
      %p135 = scmp.eq.s32.totalorder %s29, 1
      %p136 = por %p134, %p135
      %p138 = scmp.ne.s32.totalorder %s123, %s137
      %p139 = scmp.eq.s32.totalorder %s29, 0
      %p140 = por %p138, %p139
      %s142 = sadd.s32 %s141, 1
      %p145 = scmp.eq.s32.totalorder %s23, 1
      %p146 = scmp.ne.s32.totalorder %s141, %s143
      %p147 = scmp.eq.s32.totalorder %s23, 0
      %p148 = por %p146, %p147
      %p149 = scmp.ne.s32.totalorder %s141, %s143
      %p150 = scmp.eq.s32.totalorder %s28, 1
      %p151 = por %p149, %p150
      %p152 = scmp.ne.s32.totalorder %s143, %s144
      %p153 = scmp.eq.s32.totalorder %s28, 0
      %p154 = por %p152, %p153
      %p155 = scmp.ne.s32.totalorder %s143, %s144
      %p156 = scmp.eq.s32.totalorder %s29, 1
      %p157 = por %p155, %p156
      %p159 = scmp.ne.s32.totalorder %s144, %s158
      %p160 = scmp.eq.s32.totalorder %s29, 0
      %p161 = por %p159, %p160
      %s163 = sadd.s32 %s162, 1
      %p166 = scmp.eq.s32.totalorder %s23, 1
      %p167 = scmp.ne.s32.totalorder %s162, %s164
      %p168 = scmp.eq.s32.totalorder %s23, 0
      %p169 = por %p167, %p168
      %p170 = scmp.ne.s32.totalorder %s162, %s164
      %p171 = scmp.eq.s32.totalorder %s28, 1
      %p172 = por %p170, %p171
      %p173 = scmp.ne.s32.totalorder %s164, %s165
      %p174 = scmp.eq.s32.totalorder %s28, 0
      %p175 = por %p173, %p174
      %p176 = scmp.ne.s32.totalorder %s164, %s165
      %p177 = scmp.eq.s32.totalorder %s29, 1
      %p178 = por %p176, %p177
      %p180 = scmp.ne.s32.totalorder %s165, %s179
      %p181 = scmp.eq.s32.totalorder %s29, 0
      %p182 = por %p180, %p181
      %s184 = sadd.s32 %s183, 1
      %p187 = scmp.eq.s32.totalorder %s23, 1
      %p188 = scmp.ne.s32.totalorder %s183, %s185
      %p189 = scmp.eq.s32.totalorder %s23, 0
      %p190 = por %p188, %p189
      %p191 = scmp.ne.s32.totalorder %s183, %s185
      %p192 = scmp.eq.s32.totalorder %s28, 1
      %p193 = por %p191, %p192
      %p194 = scmp.ne.s32.totalorder %s185, %s186
      %p195 = scmp.eq.s32.totalorder %s28, 0
      %p196 = por %p194, %p195
      %p197 = scmp.ne.s32.totalorder %s185, %s186
      %p198 = scmp.eq.s32.totalorder %s29, 1
      %p199 = por %p197, %p198
      %p201 = scmp.ne.s32.totalorder %s186, %s200
      %p202 = scmp.eq.s32.totalorder %s29, 0
      %p203 = por %p201, %p202
      %s205 = sadd.s32 %s204, 1
      %p208 = scmp.eq.s32.totalorder %s23, 1
      %p209 = scmp.ne.s32.totalorder %s204, %s206
      %p210 = scmp.eq.s32.totalorder %s23, 0
      %p211 = por %p209, %p210
      %p212 = scmp.ne.s32.totalorder %s204, %s206
      %p213 = scmp.eq.s32.totalorder %s28, 1
      %p214 = por %p212, %p213
      %p215 = scmp.ne.s32.totalorder %s206, %s207
      %p216 = scmp.eq.s32.totalorder %s28, 0
      %p217 = por %p215, %p216
      %p218 = scmp.ne.s32.totalorder %s206, %s207
      %p219 = scmp.eq.s32.totalorder %s29, 1
      %p220 = por %p218, %p219
      %p222 = scmp.ne.s32.totalorder %s207, %s221
      %p223 = scmp.eq.s32.totalorder %s29, 0
      %p224 = por %p222, %p223
      %s225 = ssub.s32 %s23, %s30
      %p226 = scmp.eq.s32.totalorder %s225, 0
      %s228 = sadd.s32 %s227, 1
      %s229 = scalar_select %p226, %s227, %s228
      %p232 = pneg %p226
      %p233 = scmp.eq.s32.totalorder %s23, 1
      %p234 = por %p232, %p233
      %p235 = scmp.ne.s32.totalorder %s227, %s230
      %p236 = scmp.eq.s32.totalorder %s23, 0
      %p237 = por %p235, %p236
      %p238 = scmp.ne.s32.totalorder %s227, %s230
      %p239 = scmp.eq.s32.totalorder %s28, 1
      %p240 = por %p238, %p239
      %p241 = scmp.ne.s32.totalorder %s230, %s231
      %p242 = scmp.eq.s32.totalorder %s28, 0
      %p243 = por %p241, %p242
      %p244 = scmp.ne.s32.totalorder %s230, %s231
      %p245 = scmp.eq.s32.totalorder %s29, 1
      %p246 = por %p244, %p245
      %p248 = scmp.ne.s32.totalorder %s231, %s247
      %p249 = scmp.eq.s32.totalorder %s29, 0
      %p250 = por %p248, %p249
      %p251 = scmp.le.s32.totalorder 1, %s23
      %p252 = scmp.lt.s32.totalorder %s23, 3
      %p253 = pnand %p251, %p252
      %p254 = pneg %p253
      // Predicated region
      $region9: #{tpu_custom_call.1} parent=5 // pred_check
        _
      $region10: #{tpu_custom_call.1} parent=5 // pred_check_branch
        %256 = sbr.rel (%p253) target = $region12
      $region11: #{tpu_custom_call.1} parent=5 // pred_region
        %s257 = ssub.s32 %s23, 1
        // Predicated region
        $region13: #{tpu_custom_call.1} parent=11 // pred_check
          %p258 = pneg %p70
        $region14: #{tpu_custom_call.1} parent=11 // pred_check_branch
          %260 = sbr.rel (%p258) target = $region16
        $region15: #{tpu_custom_call.1} parent=11 // pred_region
          %s262 = ssub.s32 128, 128
          %263 = vsyncadd [#allocation7], %s262
          %s265 = sshll.u32 [#allocation6], 4
          %s266 = int_to_ptr.vmem [resolvable:$true] %s265
          %268 = dma.hbm_to_vmem [thread:$0]  %s1, 128, %s266, [#allocation7]
        $region16: #{tpu_custom_call.1} parent=11 // pred_fallthru
          _
        // Predicated region
        $region17: #{tpu_custom_call.1} parent=11 // pred_check
          %p269 = pneg %p91
        $region18: #{tpu_custom_call.1} parent=11 // pred_check_branch
          %271 = sbr.rel (%p269) target = $region20
        $region19: #{tpu_custom_call.1} parent=11 // pred_region
          _
        $region20: #{tpu_custom_call.1} parent=11 // pred_fallthru
          _
        // Predicated region
        $region21: #{tpu_custom_call.1} parent=11 // pred_check
          %p272 = pneg %p112
        $region22: #{tpu_custom_call.1} parent=11 // pred_check_branch
          %274 = sbr.rel (%p272) target = $region24
        $region23: #{tpu_custom_call.1} parent=11 // pred_region
          _
        $region24: #{tpu_custom_call.1} parent=11 // pred_fallthru
          _
        // Predicated region
        $region25: #{tpu_custom_call.1} parent=11 // pred_check
          %p275 = pneg %p133
        $region26: #{tpu_custom_call.1} parent=11 // pred_check_branch
          %277 = sbr.rel (%p275) target = $region28
        $region27: #{tpu_custom_call.1} parent=11 // pred_region
          %s279 = ssub.s32 3072, 3072
          %280 = vsyncadd [#allocation7], %s279
          %s281 = sshll.u32 [#allocation8], 4
          %s282 = int_to_ptr.vmem [resolvable:$true] %s281
          %287 = dma.hbm_to_vmem [thread:$0]  %s4, 3072, %s282, [#allocation7], 192, 192, 12
        $region28: #{tpu_custom_call.1} parent=11 // pred_fallthru
          _
        // Predicated region
        $region29: #{tpu_custom_call.1} parent=11 // pred_check
          %p288 = pneg %p154
        $region30: #{tpu_custom_call.1} parent=11 // pred_check_branch
          %290 = sbr.rel (%p288) target = $region32
        $region31: #{tpu_custom_call.1} parent=11 // pred_region
          %s292 = ssub.s32 1024, 1024
          %293 = vsyncadd [#allocation10], %s292
          %s294 = sshll.u32 [#allocation9], 4
          %s295 = int_to_ptr.vmem [resolvable:$true] %s294
          %300 = dma.hbm_to_vmem [thread:$0]  %s5, 1024, %s295, [#allocation10], 64, 64, 4
        $region32: #{tpu_custom_call.1} parent=11 // pred_fallthru
          _
        // Predicated region
        $region33: #{tpu_custom_call.1} parent=11 // pred_check
          %p301 = pneg %p175
        $region34: #{tpu_custom_call.1} parent=11 // pred_check_branch
          %303 = sbr.rel (%p301) target = $region36
        $region35: #{tpu_custom_call.1} parent=11 // pred_region
          _
        $region36: #{tpu_custom_call.1} parent=11 // pred_fallthru
          _
        // Predicated region
        $region37: #{tpu_custom_call.1} parent=11 // pred_check
          %p304 = pneg %p196
        $region38: #{tpu_custom_call.1} parent=11 // pred_check_branch
          %306 = sbr.rel (%p304) target = $region40
        $region39: #{tpu_custom_call.1} parent=11 // pred_region
          %s308 = ssub.s32 1024, 1024
          %309 = vsyncadd [#allocation10], %s308
          %s310 = sshll.u32 [#allocation11], 4
          %s311 = int_to_ptr.vmem [resolvable:$true] %s310
          %316 = dma.hbm_to_vmem [thread:$0]  %s7, 1024, %s311, [#allocation10], 64, 64, 4
        $region40: #{tpu_custom_call.1} parent=11 // pred_fallthru
          _
        // Predicated region
        $region41: #{tpu_custom_call.1} parent=11 // pred_check
          %p317 = pneg %p217
        $region42: #{tpu_custom_call.1} parent=11 // pred_check_branch
          %319 = sbr.rel (%p317) target = $region44
        $region43: #{tpu_custom_call.1} parent=11 // pred_region
          _
        $region44: #{tpu_custom_call.1} parent=11 // pred_fallthru
          _
      $region12: #{tpu_custom_call.1} parent=5 // pred_fallthru
        _
      %p320 = scmp.lt.s32.totalorder %s23, 2
      // Predicated region
      $region45: #{tpu_custom_call.1} parent=5 // pred_check
        %p321 = pneg %p320
      $region46: #{tpu_custom_call.1} parent=5 // pred_check_branch
        %323 = sbr.rel (%p321) target = $region48
      $region47: #{tpu_custom_call.1} parent=5 // pred_region
        // Predicated region
        $region49: #{tpu_custom_call.1} parent=47 // pred_check
          %p324 = pneg %p43
        $region50: #{tpu_custom_call.1} parent=47 // pred_check_branch
          %326 = sbr.rel (%p324) target = $region52
        $region51: #{tpu_custom_call.1} parent=47 // pred_region
          %s327 = sand.u32 %s33, 1
          %s328 = scalar_lea.sflag [#allocation4], %s327
          %s329 = sand.u32 %s33, 1
          %s330 = smul.addr %s329, 4
          %s331 = scalar_lea.vmem [#allocation3], %s330
          %s333 = ssub.s32 64, 64
          %334 = vsyncadd %s328, %s333
          %s335 = smul.addr %s23, 64
          %s336 = scalar_lea.hbm %s0, %s335
          %s338 = sshll.u32 %s331, 4
          %s339 = int_to_ptr.vmem [resolvable:$true] %s338
          %341 = dma.hbm_to_vmem [thread:$0]  %s336, 64, %s339, %s328
        $region52: #{tpu_custom_call.1} parent=47 // pred_fallthru
          _
      $region48: #{tpu_custom_call.1} parent=5 // pred_fallthru
        _
      %p342 = scmp.le.s32.totalorder 1, %s23
      %p343 = scmp.lt.s32.totalorder %s23, 3
      %p344 = pnand %p342, %p343
      %p345 = pneg %p344
      // Predicated region
      $region53: #{tpu_custom_call.1} parent=5 // pred_check
        _
      $region54: #{tpu_custom_call.1} parent=5 // pred_check_branch
        %347 = sbr.rel (%p344) target = $region56
      $region55: #{tpu_custom_call.1} parent=5 // pred_region
        %s348 = ssub.s32 %s23, 1
        %s349 = sand.u32 %s36, 1
        %s350 = scalar_lea.sflag [#allocation4], %s349
        %s351 = sand.u32 %s36, 1
        %s352 = smul.addr %s351, 4
        %s353 = scalar_lea.vmem [#allocation3], %s352
        // Predicated region
        $region57: #{tpu_custom_call.1} parent=55 // pred_check
          %p354 = pneg %p49
        $region58: #{tpu_custom_call.1} parent=55 // pred_check_branch
          %356 = sbr.rel (%p354) target = $region60
        $region59: #{tpu_custom_call.1} parent=55 // pred_region
          %357 = dma.done %s350, 64
        $region60: #{tpu_custom_call.1} parent=55 // pred_fallthru
          _
        // Predicated region
        $region61: #{tpu_custom_call.1} parent=55 // pred_check
          %p358 = pneg %p70
        $region62: #{tpu_custom_call.1} parent=55 // pred_check_branch
          %360 = sbr.rel (%p358) target = $region64
        $region63: #{tpu_custom_call.1} parent=55 // pred_region
          %361 = dma.done [#allocation7], 128
        $region64: #{tpu_custom_call.1} parent=55 // pred_fallthru
          _
        // Predicated region
        $region65: #{tpu_custom_call.1} parent=55 // pred_check
          %p362 = pneg %p133
        $region66: #{tpu_custom_call.1} parent=55 // pred_check_branch
          %364 = sbr.rel (%p362) target = $region68
        $region67: #{tpu_custom_call.1} parent=55 // pred_region
          %365 = dma.done [#allocation7], 3072
        $region68: #{tpu_custom_call.1} parent=55 // pred_fallthru
          _
        // Predicated region
        $region69: #{tpu_custom_call.1} parent=55 // pred_check
          %p366 = pneg %p154
        $region70: #{tpu_custom_call.1} parent=55 // pred_check_branch
          %368 = sbr.rel (%p366) target = $region72
        $region71: #{tpu_custom_call.1} parent=55 // pred_region
          %369 = dma.done [#allocation10], 1024
        $region72: #{tpu_custom_call.1} parent=55 // pred_fallthru
          _
        // Predicated region
        $region73: #{tpu_custom_call.1} parent=55 // pred_check
          %p370 = pneg %p196
        $region74: #{tpu_custom_call.1} parent=55 // pred_check_branch
          %372 = sbr.rel (%p370) target = $region76
        $region75: #{tpu_custom_call.1} parent=55 // pred_region
          %373 = dma.done [#allocation10], 1024
        $region76: #{tpu_custom_call.1} parent=55 // pred_fallthru
          _
        %s374 = sand.u32 %s36, 1
        %s375 = scalar_lea.sflag [#allocation4], %s374
        %s376 = sand.u32 %s36, 1
        %s377 = smul.addr %s376, 4
        %s378 = scalar_lea.vmem [#allocation3], %s377
        %p379 = pneg %p49
        %p380 = pneg %p46
        %p381 = pneg %p70
        %p382 = pneg %p67
        %p383 = pneg %p91
        %p384 = pneg %p88
        %p385 = pneg %p112
        %p386 = pneg %p109
        %p387 = pneg %p133
        %p388 = pneg %p130
        %p389 = pneg %p154
        %p390 = pneg %p151
        %p391 = pneg %p175
        %p392 = pneg %p172
        %p393 = pneg %p196
        %p394 = pneg %p193
        %p395 = pneg %p217
        %p396 = pneg %p214
        %p397 = pneg %p243
        %p398 = pneg %p240
        %s399 = sand.u32 %s230, 1
        %s400 = scalar_lea.sflag [#allocation5], %s399
        %s401 = sand.u32 %s230, 1
        %s402 = smul.addr %s401, 4
        %s403 = scalar_lea.vmem [#allocation12], %s402
        %v405 = vld [vmem:[%s353] sm:$0xf]
        %v406 = vunpack.c.l.bf16 %v405
        %v407 = vld [vmem:[%s2] sm:$0x1]
        %v408 = vld [vmem:[%s3] sm:$0x1]
        %v409 = vld [vmem:[#allocation8] sm:$0xff]
        %v410 = vld [vmem:[#allocation8 + $0x8] sm:$0xf]
        %v411 = vld [vmem:[#allocation8 + $0xc] sm:$0xff]
        %v412 = vld [vmem:[#allocation8 + $0x14] sm:$0xf]
        %v413 = vld [vmem:[#allocation8 + $0x18] sm:$0xff]
        %v414 = vld [vmem:[#allocation8 + $0x20] sm:$0xf]
        %v415 = vld [vmem:[#allocation8 + $0x24] sm:$0xff]
        %v416 = vld [vmem:[#allocation8 + $0x2c] sm:$0xf]
        %v417 = vld [vmem:[#allocation8 + $0x30] sm:$0xff]
        %v418 = vld [vmem:[#allocation8 + $0x38] sm:$0xf]
        %v419 = vld [vmem:[#allocation8 + $0x3c] sm:$0xff]
        %v420 = vld [vmem:[#allocation8 + $0x44] sm:$0xf]
        %v421 = vld [vmem:[#allocation8 + $0x48] sm:$0xff]
        %v422 = vld [vmem:[#allocation8 + $0x50] sm:$0xf]
        %v423 = vld [vmem:[#allocation8 + $0x54] sm:$0xff]
        %v424 = vld [vmem:[#allocation8 + $0x5c] sm:$0xf]
        %v425 = vld [vmem:[#allocation8 + $0x60] sm:$0xff]
        %v426 = vld [vmem:[#allocation8 + $0x68] sm:$0xf]
        %v427 = vld [vmem:[#allocation8 + $0x6c] sm:$0xff]
        %v428 = vld [vmem:[#allocation8 + $0x74] sm:$0xf]
        %v429 = vld [vmem:[#allocation8 + $0x78] sm:$0xff]
        %v430 = vld [vmem:[#allocation8 + $0x80] sm:$0xf]
        %v431 = vld [vmem:[#allocation8 + $0x84] sm:$0xff]
        %v432 = vld [vmem:[#allocation8 + $0x8c] sm:$0xf]
        %v433 = vld [vmem:[#allocation8 + $0x90] sm:$0xff]
        %v434 = vld [vmem:[#allocation8 + $0x98] sm:$0xf]
        %v435 = vld [vmem:[#allocation8 + $0x9c] sm:$0xff]
        %v436 = vld [vmem:[#allocation8 + $0xa4] sm:$0xf]
        %v437 = vld [vmem:[#allocation8 + $0xa8] sm:$0xff]
        %v438 = vld [vmem:[#allocation8 + $0xb0] sm:$0xf]
        %v439 = vld [vmem:[#allocation8 + $0xb4] sm:$0xff]
        %v440 = vld [vmem:[#allocation8 + $0xbc] sm:$0xf]
        %v441 = vld [vmem:[#allocation9] sm:$0xf]
        %v442 = vld [vmem:[#allocation9 + $0x4] sm:$0xf]
        %v443 = vld [vmem:[#allocation9 + $0x8] sm:$0xf]
        %v444 = vld [vmem:[#allocation9 + $0xc] sm:$0xf]
        %v445 = vld [vmem:[#allocation9 + $0x10] sm:$0xf]
        %v446 = vld [vmem:[#allocation9 + $0x14] sm:$0xf]
        %v447 = vld [vmem:[#allocation9 + $0x18] sm:$0xf]
        %v448 = vld [vmem:[#allocation9 + $0x1c] sm:$0xf]
        %v449 = vld [vmem:[#allocation9 + $0x20] sm:$0xf]
        %v450 = vld [vmem:[#allocation9 + $0x24] sm:$0xf]
        %v451 = vld [vmem:[#allocation9 + $0x28] sm:$0xf]
        %v452 = vld [vmem:[#allocation9 + $0x2c] sm:$0xf]
        %v453 = vld [vmem:[#allocation9 + $0x30] sm:$0xf]
        %v454 = vld [vmem:[#allocation9 + $0x34] sm:$0xf]
        %v455 = vld [vmem:[#allocation9 + $0x38] sm:$0xf]
        %v456 = vld [vmem:[#allocation9 + $0x3c] sm:$0xf]
        %v457 = vld [vmem:[%s6] sm:$0x1]
        %v458 = vld [vmem:[#allocation6] sm:$0xff]
        %459 = vadd.xlane.f32.xlu0 %v406
        %v460 = vpop.xlane.xlu0 %459
        %v461 = vrcp.pop 128.0
        %v462 = vmul.f32 %v460, %v461
        %v463 = vsub.f32 %v406, %v462
        %v464 = vmul.f32 %v463, %v463
        %465 = vadd.xlane.f32.xlu0 %v464
        %v466 = vpop.xlane.xlu0 %465
        %v467 = vmul.f32 %v466, %v461
        %v468 = vadd.f32 %v467, 1e-05
        %v469 = vrsqrt.pop %v468
        %v470 = vmul.f32 %v463, %v469
        %v472 = vlaneseq
        %v473 = vshrl.u32 %v472, 7
        %v474 = vsub.s32 0, %v473
        %v475 = vrot.slane %v407, %v474
        %v477 = vmul.f32 %v470, %v475
        %v479 = vlaneseq
        %v480 = vshrl.u32 %v479, 7
        %v481 = vsub.s32 0, %v480
        %v482 = vrot.slane %v408, %v481
        %v484 = vadd.f32 %v477, %v482
        %v485 = vpack.c.bf16 %v484, %v484
        %v518 = vunpack.c.l.b16 %v409
        %v519 = vunpack.c.h.b16 %v409
        %v520 = vunpack.c.l.b16 %v410
        %v521 = vunpack.c.l.b16 %v411
        %v522 = vunpack.c.h.b16 %v411
        %v523 = vunpack.c.l.b16 %v412
        %v524 = vunpack.c.l.b16 %v413
        %v525 = vunpack.c.h.b16 %v413
        %v526 = vunpack.c.l.b16 %v414
        %v527 = vunpack.c.l.b16 %v415
        %v528 = vunpack.c.h.b16 %v415
        %v529 = vunpack.c.l.b16 %v416
        %v530 = vunpack.c.l.b16 %v417
        %v531 = vunpack.c.h.b16 %v417
        %v532 = vunpack.c.l.b16 %v418
        %v533 = vunpack.c.l.b16 %v419
        %v534 = vunpack.c.h.b16 %v419
        %v535 = vunpack.c.l.b16 %v420
        %v536 = vunpack.c.l.b16 %v421
        %v537 = vunpack.c.h.b16 %v421
        %v538 = vunpack.c.l.b16 %v422
        %v539 = vunpack.c.l.b16 %v423
        %v540 = vunpack.c.h.b16 %v423
        %v541 = vunpack.c.l.b16 %v424
        %v542 = vunpack.c.l.b16 %v425
        %v543 = vunpack.c.h.b16 %v425
        %v544 = vunpack.c.l.b16 %v426
        %v545 = vunpack.c.l.b16 %v427
        %v546 = vunpack.c.h.b16 %v427
        %v547 = vunpack.c.l.b16 %v428
        %v548 = vunpack.c.l.b16 %v429
        %v549 = vunpack.c.h.b16 %v429
        %v550 = vunpack.c.l.b16 %v430
        %v551 = vunpack.c.l.b16 %v431
        %v552 = vunpack.c.h.b16 %v431
        %v553 = vunpack.c.l.b16 %v432
        %v554 = vunpack.c.l.b16 %v433
        %v555 = vunpack.c.h.b16 %v433
        %v556 = vunpack.c.l.b16 %v434
        %v557 = vunpack.c.l.b16 %v435
        %v558 = vunpack.c.h.b16 %v435
        %v559 = vunpack.c.l.b16 %v436
        %v560 = vunpack.c.l.b16 %v437
        %v561 = vunpack.c.h.b16 %v437
        %v562 = vunpack.c.l.b16 %v438
        %v563 = vunpack.c.l.b16 %v439
        %v564 = vunpack.c.h.b16 %v439
        %v565 = vunpack.c.l.b16 %v440
        %v566 = vpack.c.b16 %v521, %v518
        %v567 = vpack.c.b16 %v522, %v519
        %v568 = vpack.c.b16 %v523, %v520
        %v569 = vpack.c.b16 %v527, %v524
        %v570 = vpack.c.b16 %v528, %v525
        %v571 = vpack.c.b16 %v529, %v526
        %v572 = vpack.c.b16 %v533, %v530
        %v573 = vpack.c.b16 %v534, %v531
        %v574 = vpack.c.b16 %v535, %v532
        %v575 = vpack.c.b16 %v539, %v536
        %v576 = vpack.c.b16 %v540, %v537
        %v577 = vpack.c.b16 %v541, %v538
        %v578 = vpack.c.b16 %v545, %v542
        %v579 = vpack.c.b16 %v546, %v543
        %v580 = vpack.c.b16 %v547, %v544
        %v581 = vpack.c.b16 %v551, %v548
        %v582 = vpack.c.b16 %v552, %v549
        %v583 = vpack.c.b16 %v553, %v550
        %v584 = vpack.c.b16 %v557, %v554
        %v585 = vpack.c.b16 %v558, %v555
        %v586 = vpack.c.b16 %v559, %v556
        %v587 = vpack.c.b16 %v563, %v560
        %v588 = vpack.c.b16 %v564, %v561
        %v589 = vpack.c.b16 %v565, %v562
        %614 = vmatprep.subr.bf16.mxu0 %v567
        %615 = vmatpush1.bf16.msra.mxu0 %v566
        %616 = vmatprep.subr.bf16.mxu0 %v570
        %617 = vmatpush1.bf16.msra.mxu0 %v569
        %618 = vmatprep.subr.bf16.mxu0 %v573
        %619 = vmatpush1.bf16.msra.mxu0 %v572
        %620 = vmatprep.subr.bf16.mxu0 %v576
        %621 = vmatpush1.bf16.msra.mxu0 %v575
        %622 = vmatprep.subr.bf16.mxu0 %v579
        %623 = vmatpush1.bf16.msra.mxu0 %v578
        %624 = vmatprep.subr.bf16.mxu0 %v582
        %625 = vmatpush1.bf16.msra.mxu0 %v581
        %626 = vmatprep.subr.bf16.mxu0 %v585
        %627 = vmatpush1.bf16.msra.mxu0 %v584
        %628 = vmatprep.subr.bf16.mxu0 %v588
        %629 = vmatpush1.bf16.msra.mxu0 %v587
        %630 = vmatprep.subr.bf16.mxu0 0
        %631 = vmatpush1.bf16.msra.mxu0 0
        %632 = vmatprep.subr.bf16.mxu0 0
        %633 = vmatpush1.bf16.msra.mxu0 0
        %634 = vmatprep.subr.bf16.mxu0 0
        %635 = vmatpush1.bf16.msra.mxu0 0
        %636 = vmatprep.subr.bf16.mxu0 0
        %637 = vmatpush1.bf16.msra.mxu0 0
        %638 = vmatprep.subr.bf16.mxu0 0
        %639 = vmatpush1.bf16.msra.mxu0 0
        %640 = vmatprep.subr.bf16.mxu0 0
        %641 = vmatpush1.bf16.msra.mxu0 0
        %642 = vmatprep.subr.bf16.mxu0 0
        %643 = vmatpush1.bf16.msra.mxu0 0
        %644 = vmatprep.subr.bf16.mxu0 0
        %645 = vmatpush1.bf16.msra.mxu0 0
        %646 = vmatprep.mubr.bf16.mxu0 0
        %647 = vmatmul.mubr.bf16.gmra.mrb[0].mxu0 %v485
        %v648 = vpop.f32.mrb[0].mxu0
        %v649 = vadd.f32 0.0, %v648
        %v650 = vpop.f32.mrb[0].mxu0
        %v651 = vadd.f32 0.0, %v650
        %v652 = vpop.f32.mrb[0].mxu0
        %v653 = vpop.f32.mrb[0].mxu0
        %654 = vdwg.mxu0
        %655 = vmatprep.subr.bf16.mxu0 0
        %656 = vmatpush1.bf16.msra.mxu0 %v568
        %657 = vmatprep.subr.bf16.mxu0 0
        %658 = vmatpush1.bf16.msra.mxu0 %v571
        %659 = vmatprep.subr.bf16.mxu0 0
        %660 = vmatpush1.bf16.msra.mxu0 %v574
        %661 = vmatprep.subr.bf16.mxu0 0
        %662 = vmatpush1.bf16.msra.mxu0 %v577
        %663 = vmatprep.subr.bf16.mxu0 0
        %664 = vmatpush1.bf16.msra.mxu0 %v580
        %665 = vmatprep.subr.bf16.mxu0 0
        %666 = vmatpush1.bf16.msra.mxu0 %v583
        %667 = vmatprep.subr.bf16.mxu0 0
        %668 = vmatpush1.bf16.msra.mxu0 %v586
        %669 = vmatprep.subr.bf16.mxu0 0
        %670 = vmatpush1.bf16.msra.mxu0 %v589
        %671 = vmatprep.subr.bf16.mxu0 0
        %672 = vmatpush1.bf16.msra.mxu0 0
        %673 = vmatprep.subr.bf16.mxu0 0
        %674 = vmatpush1.bf16.msra.mxu0 0
        %675 = vmatprep.subr.bf16.mxu0 0
        %676 = vmatpush1.bf16.msra.mxu0 0
        %677 = vmatprep.subr.bf16.mxu0 0
        %678 = vmatpush1.bf16.msra.mxu0 0
        %679 = vmatprep.subr.bf16.mxu0 0
        %680 = vmatpush1.bf16.msra.mxu0 0
        %681 = vmatprep.subr.bf16.mxu0 0
        %682 = vmatpush1.bf16.msra.mxu0 0
        %683 = vmatprep.subr.bf16.mxu0 0
        %684 = vmatpush1.bf16.msra.mxu0 0
        %685 = vmatprep.subr.bf16.mxu0 0
        %686 = vmatpush1.bf16.msra.mxu0 0
        %687 = vmatprep.mubr.bf16.mxu0 0
        %688 = vmatmul.mubr.bf16.gmra.mrb[0].mxu0 %v485
        %v689 = vpop.f32.mrb[0].mxu0
        %v690 = vadd.f32 0.0, %v689
        %v691 = vpop.f32.mrb[0].mxu0
        %v692 = vpop.f32.mrb[0].mxu0
        %v693 = vpop.f32.mrb[0].mxu0
        %694 = vdwg.mxu0
        %v695 = vmul.f32 %v649, 0.125
        %v696 = vpack.c.bf16 %v695, %v695
        %v697 = vpack.c.bf16 %v651, %v651
        %v698 = vpack.c.bf16 %v690, %v690
        %vm699 = vcmask 523264
        %v701 = vsel %vm699, %v696, 0
        %v704 = vsel %vm699, %v697, 0
        %706 = vmatprep.subr.bf16.mxu0 0
        %707 = vmatpush1.bf16.xpose.msra.mxu0 %v704
        %708 = vmatprep.subr.bf16.mxu0 0
        %709 = vmatpush1.bf16.xpose.msra.mxu0 0
        %710 = vmatprep.subr.bf16.mxu0 0
        %711 = vmatpush1.bf16.xpose.msra.mxu0 0
        %712 = vmatprep.subr.bf16.mxu0 0
        %713 = vmatpush1.bf16.xpose.msra.mxu0 0
        %714 = vmatprep.subr.bf16.mxu0 0
        %715 = vmatpush1.bf16.xpose.msra.mxu0 0
        %716 = vmatprep.subr.bf16.mxu0 0
        %717 = vmatpush1.bf16.xpose.msra.mxu0 0
        %718 = vmatprep.subr.bf16.mxu0 0
        %719 = vmatpush1.bf16.xpose.msra.mxu0 0
        %720 = vmatprep.subr.bf16.mxu0 0
        %721 = vmatpush1.bf16.xpose.msra.mxu0 0
        %722 = vmatprep.subr.bf16.mxu0 0
        %723 = vmatpush1.bf16.xpose.msra.mxu0 0
        %724 = vmatprep.subr.bf16.mxu0 0
        %725 = vmatpush1.bf16.xpose.msra.mxu0 0
        %726 = vmatprep.subr.bf16.mxu0 0
        %727 = vmatpush1.bf16.xpose.msra.mxu0 0
        %728 = vmatprep.subr.bf16.mxu0 0
        %729 = vmatpush1.bf16.xpose.msra.mxu0 0
        %730 = vmatprep.subr.bf16.mxu0 0
        %731 = vmatpush1.bf16.xpose.msra.mxu0 0
        %732 = vmatprep.subr.bf16.mxu0 0
        %733 = vmatpush1.bf16.xpose.msra.mxu0 0
        %734 = vmatprep.subr.bf16.mxu0 0
        %735 = vmatpush1.bf16.xpose.msra.mxu0 0
        %736 = vmatprep.subr.bf16.mxu0 0
        %737 = vmatpush1.bf16.xpose.msra.mxu0 0
        %738 = vmatprep.mubr.bf16.mxu0 0
        %739 = vmatmul.mubr.bf16.gmra.mrb[0].mxu0 %v701
        %v740 = vpop.f32.mrb[0].mxu0
        %v741 = vadd.f32 %v458, %v740
        %v742 = vpop.f32.mrb[0].mxu0
        %v743 = vpop.f32.mrb[0].mxu0
        %v744 = vpop.f32.mrb[0].mxu0
        %745 = vdwg.mxu0
        %vm746 = vcmask 64512
        %v747 = vsel %vm746, %v741, -inf
        %748 = vmax.xlane.f32.xlu0 %v747
        %v749 = vpop.xlane.xlu0 %748
        %v750 = vsub.f32 %v741, %v749
        %v751 = vmul.f32 %v750, 1.442695
        %v752 = vpow.pop %v751
        %v753 = vsel %vm746, %v752, 0.0
        %754 = vadd.xlane.f32.xlu0 %v753
        %v755 = vpop.xlane.xlu0 %754
        %v756 = vrcp.pop %v755
        %v757 = vmul.f32 %v752, %v756
        %v758 = vpack.c.bf16 %v757, %v757
        %v760 = vsel %vm746, %v758, 0
        %vm762 = vcmask 1043456
        %v764 = vsel %vm762, %v698, 0
        %766 = vmatprep.subr.bf16.mxu0 0
        %767 = vmatpush1.bf16.msra.mxu0 %v764
        %768 = vmatprep.subr.bf16.mxu0 0
        %769 = vmatpush1.bf16.msra.mxu0 0
        %770 = vmatprep.subr.bf16.mxu0 0
        %771 = vmatpush1.bf16.msra.mxu0 0
        %772 = vmatprep.subr.bf16.mxu0 0
        %773 = vmatpush1.bf16.msra.mxu0 0
        %774 = vmatprep.subr.bf16.mxu0 0
        %775 = vmatpush1.bf16.msra.mxu0 0
        %776 = vmatprep.subr.bf16.mxu0 0
        %777 = vmatpush1.bf16.msra.mxu0 0
        %778 = vmatprep.subr.bf16.mxu0 0
        %779 = vmatpush1.bf16.msra.mxu0 0
        %780 = vmatprep.subr.bf16.mxu0 0
        %781 = vmatpush1.bf16.msra.mxu0 0
        %782 = vmatprep.subr.bf16.mxu0 0
        %783 = vmatpush1.bf16.msra.mxu0 0
        %784 = vmatprep.subr.bf16.mxu0 0
        %785 = vmatpush1.bf16.msra.mxu0 0
        %786 = vmatprep.subr.bf16.mxu0 0
        %787 = vmatpush1.bf16.msra.mxu0 0
        %788 = vmatprep.subr.bf16.mxu0 0
        %789 = vmatpush1.bf16.msra.mxu0 0
        %790 = vmatprep.subr.bf16.mxu0 0
        %791 = vmatpush1.bf16.msra.mxu0 0
        %792 = vmatprep.subr.bf16.mxu0 0
        %793 = vmatpush1.bf16.msra.mxu0 0
        %794 = vmatprep.subr.bf16.mxu0 0
        %795 = vmatpush1.bf16.msra.mxu0 0
        %796 = vmatprep.subr.bf16.mxu0 0
        %797 = vmatpush1.bf16.msra.mxu0 0
        %798 = vmatprep.mubr.bf16.mxu0 0
        %799 = vmatmul.mubr.bf16.gmra.mrb[0].mxu0 %v760
        %v800 = vpop.f32.mrb[0].mxu0
        %v801 = vadd.f32 0.0, %v800
        %v802 = vpop.f32.mrb[0].mxu0
        %v803 = vpop.f32.mrb[0].mxu0
        %v804 = vpop.f32.mrb[0].mxu0
        %805 = vdwg.mxu0
        %v806 = vpack.c.bf16 %v801, %v801
        %vm807 = vcmask 519168
        %808 = vst.msk [vmem:[#allocation2] sm:$0xf] %vm807, %v806
        %810 = vrot.lane.b32.xlu0 %v696, 64
        %v811 = vpop.permute.xlu0 %810
        %813 = vrot.lane.b32.xlu0 %v697, 64
        %v814 = vpop.permute.xlu0 %813
        %v816 = vsel %vm699, %v811, 0
        %v819 = vsel %vm699, %v814, 0
        %821 = vmatprep.subr.bf16.mxu0 0
        %822 = vmatpush1.bf16.xpose.msra.mxu0 %v819
        %823 = vmatprep.subr.bf16.mxu0 0
        %824 = vmatpush1.bf16.xpose.msra.mxu0 0
        %825 = vmatprep.subr.bf16.mxu0 0
        %826 = vmatpush1.bf16.xpose.msra.mxu0 0
        %827 = vmatprep.subr.bf16.mxu0 0
        %828 = vmatpush1.bf16.xpose.msra.mxu0 0
        %829 = vmatprep.subr.bf16.mxu0 0
        %830 = vmatpush1.bf16.xpose.msra.mxu0 0
        %831 = vmatprep.subr.bf16.mxu0 0
        %832 = vmatpush1.bf16.xpose.msra.mxu0 0
        %833 = vmatprep.subr.bf16.mxu0 0
        %834 = vmatpush1.bf16.xpose.msra.mxu0 0
        %835 = vmatprep.subr.bf16.mxu0 0
        %836 = vmatpush1.bf16.xpose.msra.mxu0 0
        %837 = vmatprep.subr.bf16.mxu0 0
        %838 = vmatpush1.bf16.xpose.msra.mxu0 0
        %839 = vmatprep.subr.bf16.mxu0 0
        %840 = vmatpush1.bf16.xpose.msra.mxu0 0
        %841 = vmatprep.subr.bf16.mxu0 0
        %842 = vmatpush1.bf16.xpose.msra.mxu0 0
        %843 = vmatprep.subr.bf16.mxu0 0
        %844 = vmatpush1.bf16.xpose.msra.mxu0 0
        %845 = vmatprep.subr.bf16.mxu0 0
        %846 = vmatpush1.bf16.xpose.msra.mxu0 0
        %847 = vmatprep.subr.bf16.mxu0 0
        %848 = vmatpush1.bf16.xpose.msra.mxu0 0
        %849 = vmatprep.subr.bf16.mxu0 0
        %850 = vmatpush1.bf16.xpose.msra.mxu0 0
        %851 = vmatprep.subr.bf16.mxu0 0
        %852 = vmatpush1.bf16.xpose.msra.mxu0 0
        %853 = vmatprep.mubr.bf16.mxu0 0
        %854 = vmatmul.mubr.bf16.gmra.mrb[0].mxu0 %v816
        %v855 = vpop.f32.mrb[0].mxu0
        %v856 = vadd.f32 %v458, %v855
        %v857 = vpop.f32.mrb[0].mxu0
        %v858 = vpop.f32.mrb[0].mxu0
        %v859 = vpop.f32.mrb[0].mxu0
        %860 = vdwg.mxu0
        %v861 = vsel %vm746, %v856, -inf
        %862 = vmax.xlane.f32.xlu0 %v861
        %v863 = vpop.xlane.xlu0 %862
        %v864 = vsub.f32 %v856, %v863
        %v865 = vmul.f32 %v864, 1.442695
        %v866 = vpow.pop %v865
        %v867 = vsel %vm746, %v866, 0.0
        %868 = vadd.xlane.f32.xlu0 %v867
        %v869 = vpop.xlane.xlu0 %868
        %v870 = vrcp.pop %v869
        %v871 = vmul.f32 %v866, %v870
        %v872 = vpack.c.bf16 %v871, %v871
        %874 = vrot.lane.b32.xlu0 %v698, 64
        %v875 = vpop.permute.xlu0 %874
        %v877 = vsel %vm746, %v872, 0
        %v880 = vsel %vm762, %v875, 0
        %882 = vmatprep.subr.bf16.mxu0 0
        %883 = vmatpush1.bf16.msra.mxu0 %v880
        %884 = vmatprep.subr.bf16.mxu0 0
        %885 = vmatpush1.bf16.msra.mxu0 0
        %886 = vmatprep.subr.bf16.mxu0 0
        %887 = vmatpush1.bf16.msra.mxu0 0
        %888 = vmatprep.subr.bf16.mxu0 0
        %889 = vmatpush1.bf16.msra.mxu0 0
        %890 = vmatprep.subr.bf16.mxu0 0
        %891 = vmatpush1.bf16.msra.mxu0 0
        %892 = vmatprep.subr.bf16.mxu0 0
        %893 = vmatpush1.bf16.msra.mxu0 0
        %894 = vmatprep.subr.bf16.mxu0 0
        %895 = vmatpush1.bf16.msra.mxu0 0
        %896 = vmatprep.subr.bf16.mxu0 0
        %897 = vmatpush1.bf16.msra.mxu0 0
        %898 = vmatprep.subr.bf16.mxu0 0
        %899 = vmatpush1.bf16.msra.mxu0 0
        %900 = vmatprep.subr.bf16.mxu0 0
        %901 = vmatpush1.bf16.msra.mxu0 0
        %902 = vmatprep.subr.bf16.mxu0 0
        %903 = vmatpush1.bf16.msra.mxu0 0
        %904 = vmatprep.subr.bf16.mxu0 0
        %905 = vmatpush1.bf16.msra.mxu0 0
        %906 = vmatprep.subr.bf16.mxu0 0
        %907 = vmatpush1.bf16.msra.mxu0 0
        %908 = vmatprep.subr.bf16.mxu0 0
        %909 = vmatpush1.bf16.msra.mxu0 0
        %910 = vmatprep.subr.bf16.mxu0 0
        %911 = vmatpush1.bf16.msra.mxu0 0
        %912 = vmatprep.subr.bf16.mxu0 0
        %913 = vmatpush1.bf16.msra.mxu0 0
        %914 = vmatprep.mubr.bf16.mxu0 0
        %915 = vmatmul.mubr.bf16.gmra.mrb[0].mxu0 %v877
        %v916 = vpop.f32.mrb[0].mxu0
        %v917 = vadd.f32 0.0, %v916
        %v918 = vpop.f32.mrb[0].mxu0
        %v919 = vpop.f32.mrb[0].mxu0
        %v920 = vpop.f32.mrb[0].mxu0
        %921 = vdwg.mxu0
        %v922 = vpack.c.bf16 %v917, %v917
        %v924 = vunpack.c.l.b16 %v922
        %v925 = vpack.c.b16 %v924, %v924
        %926 = vrot.lane.b32.xlu0 %v925, 64
        %v927 = vpop.permute.xlu0 %926
        %vm929 = vcmask 1043968
        %930 = vst.msk [vmem:[#allocation2] sm:$0xf] %vm929, %v927
        %v931 = vld [vmem:[#allocation2] sm:$0xf]
        %v933 = vlaneseq
        %v934 = vshrl.u32 %v933, 7
        %v935 = vsub.s32 0, %v934
        %v936 = vrot.slane %v457, %v935
        %v954 = vunpack.c.l.b16 %v441
        %v955 = vunpack.c.l.b16 %v442
        %v956 = vunpack.c.l.b16 %v443
        %v957 = vunpack.c.l.b16 %v444
        %v958 = vunpack.c.l.b16 %v445
        %v959 = vunpack.c.l.b16 %v446
        %v960 = vunpack.c.l.b16 %v447
        %v961 = vunpack.c.l.b16 %v448
        %v962 = vunpack.c.l.b16 %v449
        %v963 = vunpack.c.l.b16 %v450
        %v964 = vunpack.c.l.b16 %v451
        %v965 = vunpack.c.l.b16 %v452
        %v966 = vunpack.c.l.b16 %v453
        %v967 = vunpack.c.l.b16 %v454
        %v968 = vunpack.c.l.b16 %v455
        %v969 = vunpack.c.l.b16 %v456
        %v970 = vpack.c.b16 %v955, %v954
        %v971 = vpack.c.b16 %v957, %v956
        %v972 = vpack.c.b16 %v959, %v958
        %v973 = vpack.c.b16 %v961, %v960
        %v974 = vpack.c.b16 %v963, %v962
        %v975 = vpack.c.b16 %v965, %v964
        %v976 = vpack.c.b16 %v967, %v966
        %v977 = vpack.c.b16 %v969, %v968
        %986 = vmatprep.subr.bf16.mxu0 0
        %987 = vmatpush1.bf16.msra.mxu0 %v970
        %988 = vmatprep.subr.bf16.mxu0 0
        %989 = vmatpush1.bf16.msra.mxu0 %v971
        %990 = vmatprep.subr.bf16.mxu0 0
        %991 = vmatpush1.bf16.msra.mxu0 %v972
        %992 = vmatprep.subr.bf16.mxu0 0
        %993 = vmatpush1.bf16.msra.mxu0 %v973
        %994 = vmatprep.subr.bf16.mxu0 0
        %995 = vmatpush1.bf16.msra.mxu0 %v974
        %996 = vmatprep.subr.bf16.mxu0 0
        %997 = vmatpush1.bf16.msra.mxu0 %v975
        %998 = vmatprep.subr.bf16.mxu0 0
        %999 = vmatpush1.bf16.msra.mxu0 %v976
        %1000 = vmatprep.subr.bf16.mxu0 0
        %1001 = vmatpush1.bf16.msra.mxu0 %v977
        %1002 = vmatprep.subr.bf16.mxu0 0
        %1003 = vmatpush1.bf16.msra.mxu0 0
        %1004 = vmatprep.subr.bf16.mxu0 0
        %1005 = vmatpush1.bf16.msra.mxu0 0
        %1006 = vmatprep.subr.bf16.mxu0 0
        %1007 = vmatpush1.bf16.msra.mxu0 0
        %1008 = vmatprep.subr.bf16.mxu0 0
        %1009 = vmatpush1.bf16.msra.mxu0 0
        %1010 = vmatprep.subr.bf16.mxu0 0
        %1011 = vmatpush1.bf16.msra.mxu0 0
        %1012 = vmatprep.subr.bf16.mxu0 0
        %1013 = vmatpush1.bf16.msra.mxu0 0
        %1014 = vmatprep.subr.bf16.mxu0 0
        %1015 = vmatpush1.bf16.msra.mxu0 0
        %1016 = vmatprep.subr.bf16.mxu0 0
        %1017 = vmatpush1.bf16.msra.mxu0 0
        %1018 = vmatprep.mubr.bf16.mxu0 0
        %1019 = vmatmul.mubr.bf16.gmra.mrb[0].mxu0 %v931
        %v1020 = vpop.f32.mrb[0].mxu0
        %v1021 = vadd.f32 %v936, %v1020
        %v1022 = vpop.f32.mrb[0].mxu0
        %v1023 = vpop.f32.mrb[0].mxu0
        %v1024 = vpop.f32.mrb[0].mxu0
        %1025 = vdwg.mxu0
        %v1026 = vpack.c.bf16 %v1021, %v1021
        %v1027 = vld [vmem:[#allocation11] sm:$0xf]
        %v1028 = vld [vmem:[#allocation11 + $0x4] sm:$0xf]
        %v1029 = vld [vmem:[#allocation11 + $0x8] sm:$0xf]
        %v1030 = vld [vmem:[#allocation11 + $0xc] sm:$0xf]
        %v1031 = vld [vmem:[#allocation11 + $0x10] sm:$0xf]
        %v1032 = vld [vmem:[#allocation11 + $0x14] sm:$0xf]
        %v1033 = vld [vmem:[#allocation11 + $0x18] sm:$0xf]
        %v1034 = vld [vmem:[#allocation11 + $0x1c] sm:$0xf]
        %v1035 = vld [vmem:[#allocation11 + $0x20] sm:$0xf]
        %v1036 = vld [vmem:[#allocation11 + $0x24] sm:$0xf]
        %v1037 = vld [vmem:[#allocation11 + $0x28] sm:$0xf]
        %v1038 = vld [vmem:[#allocation11 + $0x2c] sm:$0xf]
        %v1039 = vld [vmem:[#allocation11 + $0x30] sm:$0xf]
        %v1040 = vld [vmem:[#allocation11 + $0x34] sm:$0xf]
        %v1041 = vld [vmem:[#allocation11 + $0x38] sm:$0xf]
        %v1042 = vld [vmem:[#allocation11 + $0x3c] sm:$0xf]
        %v1043 = vld [vmem:[%s8] sm:$0x1]
        %v1045 = vlaneseq
        %v1046 = vshrl.u32 %v1045, 7
        %v1047 = vsub.s32 0, %v1046
        %v1048 = vrot.slane %v1043, %v1047
        %v1066 = vunpack.c.l.b16 %v1027
        %v1067 = vunpack.c.l.b16 %v1028
        %v1068 = vunpack.c.l.b16 %v1029
        %v1069 = vunpack.c.l.b16 %v1030
        %v1070 = vunpack.c.l.b16 %v1031
        %v1071 = vunpack.c.l.b16 %v1032
        %v1072 = vunpack.c.l.b16 %v1033
        %v1073 = vunpack.c.l.b16 %v1034
        %v1074 = vunpack.c.l.b16 %v1035
        %v1075 = vunpack.c.l.b16 %v1036
        %v1076 = vunpack.c.l.b16 %v1037
        %v1077 = vunpack.c.l.b16 %v1038
        %v1078 = vunpack.c.l.b16 %v1039
        %v1079 = vunpack.c.l.b16 %v1040
        %v1080 = vunpack.c.l.b16 %v1041
        %v1081 = vunpack.c.l.b16 %v1042
        %v1082 = vpack.c.b16 %v1067, %v1066
        %v1083 = vpack.c.b16 %v1069, %v1068
        %v1084 = vpack.c.b16 %v1071, %v1070
        %v1085 = vpack.c.b16 %v1073, %v1072
        %v1086 = vpack.c.b16 %v1075, %v1074
        %v1087 = vpack.c.b16 %v1077, %v1076
        %v1088 = vpack.c.b16 %v1079, %v1078
        %v1089 = vpack.c.b16 %v1081, %v1080
        %1098 = vmatprep.subr.bf16.mxu0 0
        %1099 = vmatpush1.bf16.msra.mxu0 %v1082
        %1100 = vmatprep.subr.bf16.mxu0 0
        %1101 = vmatpush1.bf16.msra.mxu0 %v1083
        %1102 = vmatprep.subr.bf16.mxu0 0
        %1103 = vmatpush1.bf16.msra.mxu0 %v1084
        %1104 = vmatprep.subr.bf16.mxu0 0
        %1105 = vmatpush1.bf16.msra.mxu0 %v1085
        %1106 = vmatprep.subr.bf16.mxu0 0
        %1107 = vmatpush1.bf16.msra.mxu0 %v1086
        %1108 = vmatprep.subr.bf16.mxu0 0
        %1109 = vmatpush1.bf16.msra.mxu0 %v1087
        %1110 = vmatprep.subr.bf16.mxu0 0
        %1111 = vmatpush1.bf16.msra.mxu0 %v1088
        %1112 = vmatprep.subr.bf16.mxu0 0
        %1113 = vmatpush1.bf16.msra.mxu0 %v1089
        %1114 = vmatprep.subr.bf16.mxu0 0
        %1115 = vmatpush1.bf16.msra.mxu0 0
        %1116 = vmatprep.subr.bf16.mxu0 0
        %1117 = vmatpush1.bf16.msra.mxu0 0
        %1118 = vmatprep.subr.bf16.mxu0 0
        %1119 = vmatpush1.bf16.msra.mxu0 0
        %1120 = vmatprep.subr.bf16.mxu0 0
        %1121 = vmatpush1.bf16.msra.mxu0 0
        %1122 = vmatprep.subr.bf16.mxu0 0
        %1123 = vmatpush1.bf16.msra.mxu0 0
        %1124 = vmatprep.subr.bf16.mxu0 0
        %1125 = vmatpush1.bf16.msra.mxu0 0
        %1126 = vmatprep.subr.bf16.mxu0 0
        %1127 = vmatpush1.bf16.msra.mxu0 0
        %1128 = vmatprep.subr.bf16.mxu0 0
        %1129 = vmatpush1.bf16.msra.mxu0 0
        %1130 = vmatprep.mubr.bf16.mxu0 0
        %1131 = vmatmul.mubr.bf16.gmra.mrb[0].mxu0 %v1026
        %v1132 = vpop.f32.mrb[0].mxu0
        %v1133 = vadd.f32 %v1048, %v1132
        %v1134 = vpop.f32.mrb[0].mxu0
        %v1135 = vpop.f32.mrb[0].mxu0
        %v1136 = vpop.f32.mrb[0].mxu0
        %1137 = vdwg.mxu0
        %v1138 = vadd.f32 %v406, %v1133
        %v1139 = vpack.c.bf16 %v1138, %v1138
        %1140 = vst [vmem:[%s403] sm:$0xf] %v1139
        %s1141 = sand.u32 %s230, 1
        %s1142 = scalar_lea.sflag [#allocation5], %s1141
        %s1143 = sand.u32 %s230, 1
        %s1144 = smul.addr %s1143, 4
        %s1145 = scalar_lea.vmem [#allocation12], %s1144
        // Predicated region
        $region77: #{tpu_custom_call.1} parent=55 // pred_check
          %p1146 = pneg %p240
        $region78: #{tpu_custom_call.1} parent=55 // pred_check_branch
          %1148 = sbr.rel (%p1146) target = $region80
        $region79: #{tpu_custom_call.1} parent=55 // pred_region
          %s1150 = ssub.s32 64, 64
          %1151 = vsyncadd %s1142, %s1150
          %s1152 = smul.addr %s28, 64
          %s1153 = scalar_lea.hbm %s9, %s1152
          %s1155 = sshll.u32 %s1145, 4
          %s1156 = int_to_ptr.vmem [resolvable:$true] %s1155
          %1158 = dma.vmem_to_hbm [thread:$0]  %s1156, 64, %s1153, %s1142
        $region80: #{tpu_custom_call.1} parent=55 // pred_fallthru
          _
      $region56: #{tpu_custom_call.1} parent=5 // pred_fallthru
        _
      %p1159 = scmp.le.s32.totalorder 2, %s23
      // Predicated region
      $region81: #{tpu_custom_call.1} parent=5 // pred_check
        %p1160 = pneg %p1159
      $region82: #{tpu_custom_call.1} parent=5 // pred_check_branch
        %1162 = sbr.rel (%p1160) target = $region84
      $region83: #{tpu_custom_call.1} parent=5 // pred_region
        %s1163 = ssub.s32 %s23, 2
        // Predicated region
        $region85: #{tpu_custom_call.1} parent=83 // pred_check
          %p1164 = pneg %p246
        $region86: #{tpu_custom_call.1} parent=83 // pred_check_branch
          %1166 = sbr.rel (%p1164) target = $region88
        $region87: #{tpu_custom_call.1} parent=83 // pred_region
          %s1167 = sand.u32 %s231, 1
          %s1168 = scalar_lea.sflag [#allocation5], %s1167
          %s1169 = sand.u32 %s231, 1
          %s1170 = smul.addr %s1169, 4
          %s1171 = scalar_lea.vmem [#allocation12], %s1170
          %1172 = dma.done %s1168, 64
        $region88: #{tpu_custom_call.1} parent=83 // pred_fallthru
          _
      $region84: #{tpu_custom_call.1} parent=5 // pred_fallthru
        _
    $region6: #{tpu_custom_call.1} parent=1 // loop_footer
      %s27 = sadd.s32 1, %s23
    $region7: #{tpu_custom_call.1} parent=1 // loop_footer_branch
      %22 = sbr.rel target = $region3
    $region8: #{tpu_custom_call.1} parent=1 // loop_exit
      _
    %1173 = vsyncpa [#allocation4], 1
    %s1174 = scalar_lea.sflag [#allocation4], 1
    %1175 = vsyncpa %s1174, 1
    %1176 = vsyncpa [#allocation7], 1
    %1177 = vsyncpa [#allocation10], 1
    %1178 = vsyncpa [#allocation5], 1
    %s1179 = scalar_lea.sflag [#allocation5], 1
    %1180 = vsyncpa %s1179, 1

</llo_original>
